<compile_context>
chip_gen: v7x
topology: tpu7x:2x2x1
jax: 0.10.0
libtpu: 0.0.40
codegen_flags: <defaults>
</compile_context>

<pallas_src>
import math

import jax
import jax.numpy as jnp
from jax import lax
from jax.experimental import pallas as pl
from jax.experimental.pallas import tpu as pltpu

GROUPS = 16       # nn.GroupNorm(16, channels)
EPS = 1e-5        # PyTorch GroupNorm default eps


def attention_block_kernel(x_ref, member_ref, gamma_ref, beta_ref,
                           wq_ref, bq_ref, wk_ref, bk_ref, wv_ref, bv_ref,
                           wproj_ref, bproj_ref, o_ref,
                           q_sc, k_sc, v_sc):
    c, hw = x_ref.shape
    tq = o_ref.shape[1]
    qi = pl.program_id(1)

    # ---- per-batch preamble: GroupNorm + q/k/v projections, staged once -----
    @pl.when(qi == 0)
    def _():
        x = x_ref[...]                                       # (c, hw) f32
        cg = c // GROUPS
        inv_n = 1.0 / (cg * hw)

        # Single pass over x: per-channel sum and sum-of-squares, then aggregate
        # to per-group stats with a tiny (c, c) group-membership matmul (f32).
        row_sum = jnp.sum(x, axis=1, keepdims=True)          # (c, 1)
        row_sq = jnp.sum(x * x, axis=1, keepdims=True)       # (c, 1)
        member = member_ref[...]                             # (c, c) 0/1 f32
        mean = jnp.dot(member, row_sum,
                       preferred_element_type=jnp.float32) * inv_n
        ex2 = jnp.dot(member, row_sq,
                      preferred_element_type=jnp.float32) * inv_n
        var = ex2 - mean * mean
        scale = gamma_ref[...] * lax.rsqrt(var + EPS)        # (c, 1)
        shift = beta_ref[...] - mean * scale                 # (c, 1)
        xn = (x * scale + shift).astype(jnp.bfloat16)        # (c, hw) bf16

        # 1x1 qkv conv, split into three (c, c) matmuls; q rows already carry
        # the 1/sqrt(c) attention scale (folded in the wrapper).
        q_sc[...] = (jnp.dot(wq_ref[...], xn, preferred_element_type=jnp.float32)
                     + bq_ref[...]).astype(jnp.bfloat16)
        k_sc[...] = (jnp.dot(wk_ref[...], xn, preferred_element_type=jnp.float32)
                     + bk_ref[...]).astype(jnp.bfloat16)
        v_sc[...] = (jnp.dot(wv_ref[...], xn, preferred_element_type=jnp.float32)
                     + bv_ref[...]).astype(jnp.bfloat16)

    # ---- one query tile of spatial self-attention ---------------------------
    q_off = pl.multiple_of(qi * tq, 128)
    q_tile = q_sc[:, pl.ds(q_off, tq)]                       # (c, tq) bf16

    # logits[i, j] = sum_ch q[ch, q_off + i] * k[ch, j]   (scale already folded)
    logits = lax.dot_general(q_tile, k_sc[...], (((0,), (0,)), ((), ())),
                             preferred_element_type=jnp.float32)   # (tq, hw)
    m = jnp.max(logits, axis=-1, keepdims=True)
    p = jnp.exp(logits - m)                                  # (tq, hw) f32
    p_b = p.astype(jnp.bfloat16)

    # Row-sums as a (1, tq) lane vector via a tiny MXU matmul (avoids an explicit
    # (tq,1)->(1,tq) transpose); normalization is applied after the PV matmul.
    l_row = lax.dot_general(jnp.ones((1, hw), jnp.float32), p,
                            (((1,), (1,)), ((), ())),
                            preferred_element_type=jnp.float32)    # (1, tq)
    inv_l = pl.reciprocal(l_row, approx=True)                      # (1, tq)

    # attn_out[ch, i] = sum_j v[ch, j] * p[i, j]  -> (c, tq), already (C, HW) layout
    attn_out = lax.dot_general(v_sc[...], p_b, (((1,), (1,)), ((), ())),
                               preferred_element_type=jnp.float32)
    attn_out = (attn_out * inv_l).astype(jnp.bfloat16)             # (c, tq) bf16

    # 1x1 proj + residual for this column slab
    proj = jnp.dot(wproj_ref[...], attn_out,
                   preferred_element_type=jnp.float32) + bproj_ref[...]
    o_ref[...] = x_ref[:, pl.ds(q_off, tq)] + proj


def attention_block(x, gamma, beta, w_qkv, b_qkv, w_proj, b_proj, *, tq=None):
    """x: (B, C, H, W) f32. Conv weights in PyTorch layout (out, in, 1, 1)."""
    b, c, h, w = x.shape
    assert c % GROUPS == 0, "channels must be divisible by 16 (GroupNorm groups)"
    hw = h * w
    if tq is None:
        # Query-tile size: lane-dense (multiple of 128); bump to 256+ on real
        # shapes (C~512, HW~4096) per VMEM budget of the target generation.
        tq = min(hw, 256)
    assert hw % tq == 0 and (tq % 128 == 0 or tq == hw)
    nq = hw // tq

    x2 = x.reshape(b, c, hw).astype(jnp.float32)          # pure reshape, no transpose

    # Split qkv conv into three (c, c) weights, fold 1/sqrt(c) into the q rows.
    inv_sqrt_c = 1.0 / math.sqrt(c)
    wqkv = w_qkv.reshape(3 * c, c).astype(jnp.float32)
    wq = (wqkv[0:c] * inv_sqrt_c).astype(jnp.bfloat16)
    wk = wqkv[c:2 * c].astype(jnp.bfloat16)
    wv = wqkv[2 * c:3 * c].astype(jnp.bfloat16)
    bq = (b_qkv[0:c] * inv_sqrt_c).reshape(c, 1).astype(jnp.float32)
    bk = b_qkv[c:2 * c].reshape(c, 1).astype(jnp.float32)
    bv = b_qkv[2 * c:3 * c].reshape(c, 1).astype(jnp.float32)
    wproj = w_proj.reshape(c, c).astype(jnp.bfloat16)
    bproj = b_proj.reshape(c, 1).astype(jnp.float32)
    g2 = gamma.reshape(c, 1).astype(jnp.float32)
    bt2 = beta.reshape(c, 1).astype(jnp.float32)

    # Resident group-membership matrix (kept f32 so group stats stay full precision).
    gi = jnp.arange(c) // (c // GROUPS)
    member = (gi[:, None] == gi[None, :]).astype(jnp.float32)   # (c, c)

    resident = lambda shape: pl.BlockSpec(shape, lambda i, j: (0,) * len(shape))

    out = pl.pallas_call(
        attention_block_kernel,
        out_shape=jax.ShapeDtypeStruct((b, c, hw), jnp.float32),
        grid_spec=pltpu.PrefetchScalarGridSpec(
            num_scalar_prefetch=0,
            grid=(b, nq),
            in_specs=[
                # x: one batch element, resident across all q tiles of that batch
                pl.BlockSpec((None, c, hw), lambda i, j: (i, 0, 0)),
                resident((c, c)),       # group-membership
                resident((c, 1)),       # gamma
                resident((c, 1)),       # beta
                resident((c, c)),       # W_q (pre-scaled)
                resident((c, 1)),       # b_q (pre-scaled)
                resident((c, c)),       # W_k
                resident((c, 1)),       # b_k
                resident((c, c)),       # W_v
                resident((c, 1)),       # b_v
                resident((c, c)),       # W_proj
                resident((c, 1)),       # b_proj
            ],
            out_specs=pl.BlockSpec((None, c, tq), lambda i, j: (i, 0, j)),
            scratch_shapes=[
                pltpu.VMEM((c, hw), jnp.bfloat16),   # q (scaled), per-batch resident
                pltpu.VMEM((c, hw), jnp.bfloat16),   # k
                pltpu.VMEM((c, hw), jnp.bfloat16),   # v
            ],
        ),
        compiler_params=pltpu.CompilerParams(
            dimension_semantics=("parallel", "arbitrary"),
            vmem_limit_bytes=48 * 1024 * 1024,
        ),
    )(x2, member, g2, bt2, wq, bq, wk, bk, wv, bv, wproj, bproj)
    return out.reshape(b, c, h, w)


def reference(x, gamma, beta, w_qkv, b_qkv, w_proj, b_proj):
    """Pure-JAX mirror of the PyTorch AttentionBlock.forward (f32)."""
    b, c, h, w = x.shape
    cg = c // GROUPS
    xg = x.reshape(b, GROUPS, cg, h, w)
    mean = xg.mean(axis=(2, 3, 4), keepdims=True)
    var = ((xg - mean) ** 2).mean(axis=(2, 3, 4), keepdims=True)
    xn = ((xg - mean) / jnp.sqrt(var + EPS)).reshape(b, c, h, w)
    xn = xn * gamma[None, :, None, None] + beta[None, :, None, None]

    qkv = jnp.einsum('oc,bcn->bon', w_qkv.reshape(3 * c, c),
                     xn.reshape(b, c, h * w)) + b_qkv[None, :, None]
    q, k, v = jnp.split(qkv, 3, axis=1)                 # each (b, c, hw)
    attn = jnp.einsum('bci,bcj->bij', q, k) / math.sqrt(c)
    attn = jax.nn.softmax(attn, axis=-1)
    out = jnp.einsum('bij,bcj->bci', attn, v)           # (b, c, hw)
    proj = jnp.einsum('oc,bcn->bon', w_proj.reshape(c, c), out) + b_proj[None, :, None]
    return x + proj.reshape(b, c, h, w)


if __name__ == "__main__":
    # Small correctness smoke test (NOT a perf config — tune tiles at C~512, HW~4096).
    B, C, H, W = 2, 32, 16, 16          # C divisible by 16 (GroupNorm groups), HW=256

    key = jax.random.PRNGKey(0)
    kx, kg, kb, kwq, kbq, kwp, kbp = jax.random.split(key, 7)

    x = jax.random.normal(kx, (B, C, H, W), jnp.float32)
    gamma = 1.0 + 0.1 * jax.random.normal(kg, (C,), jnp.float32)
    beta = 0.1 * jax.random.normal(kb, (C,), jnp.float32)

    # nn.Conv2d default init: U(-1/sqrt(fan_in), 1/sqrt(fan_in)), fan_in = C for 1x1 conv
    bound = 1.0 / math.sqrt(C)
    w_qkv = jax.random.uniform(kwq, (3 * C, C, 1, 1), jnp.float32, -bound, bound)
    b_qkv = jax.random.uniform(kbq, (3 * C,), jnp.float32, -bound, bound)
    w_proj = jax.random.uniform(kwp, (C, C, 1, 1), jnp.float32, -bound, bound)
    b_proj = jax.random.uniform(kbp, (C,), jnp.float32, -bound, bound)

    # tq=128 -> 2 query tiles per batch: exercises the staged-k/v + tiled path.
    out = attention_block(x, gamma, beta, w_qkv, b_qkv, w_proj, b_proj, tq=128)
    out = jax.block_until_ready(out)

    ref = reference(x, gamma, beta, w_qkv, b_qkv, w_proj, b_proj)
    assert out.shape == x.shape
    max_err = float(jnp.max(jnp.abs(out - ref)))
    assert jnp.allclose(out, ref, atol=2e-2, rtol=2e-2), \
        f"mismatch vs reference, max abs err {max_err}"

    print("KERNEL_OK")
</pallas_src>

<mosaic_0001>
module attributes {stable_mosaic.version = 11 : i64} {
  func.func @attention_block_kernel(%arg0: i32, %arg1: i32, %arg2: memref<1x32x256xf32, #tpu.memory_space<vmem>>, %arg3: memref<32x32xf32, #tpu.memory_space<vmem>>, %arg4: memref<32x1xf32, #tpu.memory_space<vmem>>, %arg5: memref<32x1xf32, #tpu.memory_space<vmem>>, %arg6: memref<32x32xbf16, #tpu.memory_space<vmem>>, %arg7: memref<32x1xf32, #tpu.memory_space<vmem>>, %arg8: memref<32x32xbf16, #tpu.memory_space<vmem>>, %arg9: memref<32x1xf32, #tpu.memory_space<vmem>>, %arg10: memref<32x32xbf16, #tpu.memory_space<vmem>>, %arg11: memref<32x1xf32, #tpu.memory_space<vmem>>, %arg12: memref<32x32xbf16, #tpu.memory_space<vmem>>, %arg13: memref<32x1xf32, #tpu.memory_space<vmem>>, %arg14: memref<1x32x128xf32, #tpu.memory_space<vmem>>, %arg15: memref<32x256xbf16, #tpu.memory_space<vmem>>, %arg16: memref<32x256xbf16, #tpu.memory_space<vmem>>, %arg17: memref<32x256xbf16, #tpu.memory_space<vmem>>) attributes {dimension_semantics = [#tpu.dimension_semantics<parallel>, #tpu.dimension_semantics<arbitrary>], iteration_bounds = array<i64: 2, 2>, scalar_prefetch = 0 : i64, scratch_operands = 3 : i64, tpu.core_type = #tpu.core_type<tc>, window_params = [{transform_indices = @transform_0, window_bounds = array<i64: 1, 32, 256>}, {pipeline_mode = #tpu.pipeline_mode<synchronous>, transform_indices = @transform_1, window_bounds = array<i64: 32, 32>}, {pipeline_mode = #tpu.pipeline_mode<synchronous>, transform_indices = @transform_2, window_bounds = array<i64: 32, 1>}, {pipeline_mode = #tpu.pipeline_mode<synchronous>, transform_indices = @transform_3, window_bounds = array<i64: 32, 1>}, {pipeline_mode = #tpu.pipeline_mode<synchronous>, transform_indices = @transform_4, window_bounds = array<i64: 32, 32>}, {pipeline_mode = #tpu.pipeline_mode<synchronous>, transform_indices = @transform_5, window_bounds = array<i64: 32, 1>}, {pipeline_mode = #tpu.pipeline_mode<synchronous>, transform_indices = @transform_6, window_bounds = array<i64: 32, 32>}, {pipeline_mode = #tpu.pipeline_mode<synchronous>, transform_indices = @transform_7, window_bounds = array<i64: 32, 1>}, {pipeline_mode = #tpu.pipeline_mode<synchronous>, transform_indices = @transform_8, window_bounds = array<i64: 32, 32>}, {pipeline_mode = #tpu.pipeline_mode<synchronous>, transform_indices = @transform_9, window_bounds = array<i64: 32, 1>}, {pipeline_mode = #tpu.pipeline_mode<synchronous>, transform_indices = @transform_10, window_bounds = array<i64: 32, 32>}, {pipeline_mode = #tpu.pipeline_mode<synchronous>, transform_indices = @transform_11, window_bounds = array<i64: 32, 1>}, {transform_indices = @transform_12, window_bounds = array<i64: 1, 32, 128>}]} {
    %c0_i32 = arith.constant 0 : i32
    %0 = arith.cmpi eq, %arg1, %c0_i32 : i32
    %1 = arith.extui %0 : i1 to i32
    %c0_i32_0 = arith.constant 0 : i32
    %2 = arith.cmpi ne, %1, %c0_i32_0 : i32
    scf.if %2 {
      %c0_19 = arith.constant 0 : index
      %c0_20 = arith.constant 0 : index
      %c0_21 = arith.constant 0 : index
      %35 = vector.load %arg2[%c0_19, %c0_20, %c0_21] : memref<1x32x256xf32, #tpu.memory_space<vmem>>, vector<1x32x256xf32>
      %36 = vector.shape_cast %35 : vector<1x32x256xf32> to vector<32x256xf32>
      %cst_22 = arith.constant dense<0.000000e+00> : vector<32xf32>
      %37 = vector.multi_reduction <add>, %36, %cst_22 [1] : vector<32x256xf32> to vector<32xf32>
      %38 = vector.shape_cast %37 : vector<32xf32> to vector<32x1xf32>
      %39 = arith.mulf %36, %36 : vector<32x256xf32>
      %cst_23 = arith.constant dense<0.000000e+00> : vector<32xf32>
      %40 = vector.multi_reduction <add>, %39, %cst_23 [1] : vector<32x256xf32> to vector<32xf32>
      %41 = vector.shape_cast %40 : vector<32xf32> to vector<32x1xf32>
      %c0_24 = arith.constant 0 : index
      %c0_25 = arith.constant 0 : index
      %42 = vector.load %arg3[%c0_24, %c0_25] : memref<32x32xf32, #tpu.memory_space<vmem>>, vector<32x32xf32>
      %cst_26 = arith.constant dense<0.000000e+00> : vector<32x1xf32>
      %43 = tpu.matmul %42, %38, %cst_26 {dimension_numbers = #tpu.dot_dimension_numbers<[1], [0], [0], [1], [0, 0, 1, 1], [], []>} : vector<32x32xf32>, vector<32x1xf32>, vector<32x1xf32> -> vector<32x1xf32>
      %cst_27 = arith.constant 0.001953125 : f32
      %44 = vector.broadcast %cst_27 : f32 to vector<32x1xf32>
      %45 = arith.mulf %43, %44 : vector<32x1xf32>
      %cst_28 = arith.constant dense<0.000000e+00> : vector<32x1xf32>
      %46 = tpu.matmul %42, %41, %cst_28 {dimension_numbers = #tpu.dot_dimension_numbers<[1], [0], [0], [1], [0, 0, 1, 1], [], []>} : vector<32x32xf32>, vector<32x1xf32>, vector<32x1xf32> -> vector<32x1xf32>
      %cst_29 = arith.constant 0.001953125 : f32
      %47 = vector.broadcast %cst_29 : f32 to vector<32x1xf32>
      %48 = arith.mulf %46, %47 : vector<32x1xf32>
      %49 = arith.mulf %45, %45 : vector<32x1xf32>
      %50 = arith.subf %48, %49 : vector<32x1xf32>
      %c0_30 = arith.constant 0 : index
      %c0_31 = arith.constant 0 : index
      %51 = vector.load %arg4[%c0_30, %c0_31] : memref<32x1xf32, #tpu.memory_space<vmem>>, vector<32x1xf32>
      %cst_32 = arith.constant 9.99999974E-6 : f32
      %52 = vector.broadcast %cst_32 : f32 to vector<32x1xf32>
      %53 = arith.addf %50, %52 : vector<32x1xf32>
      %54 = math.rsqrt %53 : vector<32x1xf32>
      %55 = arith.mulf %51, %54 : vector<32x1xf32>
      %c0_33 = arith.constant 0 : index
      %c0_34 = arith.constant 0 : index
      %56 = vector.load %arg5[%c0_33, %c0_34] : memref<32x1xf32, #tpu.memory_space<vmem>>, vector<32x1xf32>
      %57 = arith.mulf %45, %55 : vector<32x1xf32>
      %58 = arith.subf %56, %57 : vector<32x1xf32>
      %59 = vector.broadcast %55 : vector<32x1xf32> to vector<32x256xf32>
      %60 = arith.mulf %36, %59 : vector<32x256xf32>
      %61 = vector.broadcast %58 : vector<32x1xf32> to vector<32x256xf32>
      %62 = arith.addf %60, %61 : vector<32x256xf32>
      %63 = arith.truncf %62 : vector<32x256xf32> to vector<32x256xbf16>
      %c0_35 = arith.constant 0 : index
      %c0_36 = arith.constant 0 : index
      %64 = vector.load %arg6[%c0_35, %c0_36] : memref<32x32xbf16, #tpu.memory_space<vmem>>, vector<32x32xbf16>
      %cst_37 = arith.constant dense<0.000000e+00> : vector<32x256xf32>
      %65 = tpu.matmul %64, %63, %cst_37 {dimension_numbers = #tpu.dot_dimension_numbers<[1], [0], [0], [1], [0, 0, 1, 1], [], []>} : vector<32x32xbf16>, vector<32x256xbf16>, vector<32x256xf32> -> vector<32x256xf32>
      %c0_38 = arith.constant 0 : index
      %c0_39 = arith.constant 0 : index
      %66 = vector.load %arg7[%c0_38, %c0_39] : memref<32x1xf32, #tpu.memory_space<vmem>>, vector<32x1xf32>
      %67 = vector.broadcast %66 : vector<32x1xf32> to vector<32x256xf32>
      %68 = arith.addf %65, %67 : vector<32x256xf32>
      %69 = arith.truncf %68 : vector<32x256xf32> to vector<32x256xbf16>
      %c0_40 = arith.constant 0 : index
      %c0_41 = arith.constant 0 : index
      %70 = vector.load %arg15[%c0_40, %c0_41] : memref<32x256xbf16, #tpu.memory_space<vmem>>, vector<32x256xbf16>
      tpu.vector_store %arg15[%c0_40, %c0_41], %69 {strides = array<i32>} : memref<32x256xbf16, #tpu.memory_space<vmem>>, vector<32x256xbf16>,
      %c0_42 = arith.constant 0 : index
      %c0_43 = arith.constant 0 : index
      %71 = vector.load %arg8[%c0_42, %c0_43] : memref<32x32xbf16, #tpu.memory_space<vmem>>, vector<32x32xbf16>
      %cst_44 = arith.constant dense<0.000000e+00> : vector<32x256xf32>
      %72 = tpu.matmul %71, %63, %cst_44 {dimension_numbers = #tpu.dot_dimension_numbers<[1], [0], [0], [1], [0, 0, 1, 1], [], []>} : vector<32x32xbf16>, vector<32x256xbf16>, vector<32x256xf32> -> vector<32x256xf32>
      %c0_45 = arith.constant 0 : index
      %c0_46 = arith.constant 0 : index
      %73 = vector.load %arg9[%c0_45, %c0_46] : memref<32x1xf32, #tpu.memory_space<vmem>>, vector<32x1xf32>
      %74 = vector.broadcast %73 : vector<32x1xf32> to vector<32x256xf32>
      %75 = arith.addf %72, %74 : vector<32x256xf32>
      %76 = arith.truncf %75 : vector<32x256xf32> to vector<32x256xbf16>
      %c0_47 = arith.constant 0 : index
      %c0_48 = arith.constant 0 : index
      %77 = vector.load %arg16[%c0_47, %c0_48] : memref<32x256xbf16, #tpu.memory_space<vmem>>, vector<32x256xbf16>
      tpu.vector_store %arg16[%c0_47, %c0_48], %76 {strides = array<i32>} : memref<32x256xbf16, #tpu.memory_space<vmem>>, vector<32x256xbf16>,
      %c0_49 = arith.constant 0 : index
      %c0_50 = arith.constant 0 : index
      %78 = vector.load %arg10[%c0_49, %c0_50] : memref<32x32xbf16, #tpu.memory_space<vmem>>, vector<32x32xbf16>
      %cst_51 = arith.constant dense<0.000000e+00> : vector<32x256xf32>
      %79 = tpu.matmul %78, %63, %cst_51 {dimension_numbers = #tpu.dot_dimension_numbers<[1], [0], [0], [1], [0, 0, 1, 1], [], []>} : vector<32x32xbf16>, vector<32x256xbf16>, vector<32x256xf32> -> vector<32x256xf32>
      %c0_52 = arith.constant 0 : index
      %c0_53 = arith.constant 0 : index
      %80 = vector.load %arg11[%c0_52, %c0_53] : memref<32x1xf32, #tpu.memory_space<vmem>>, vector<32x1xf32>
      %81 = vector.broadcast %80 : vector<32x1xf32> to vector<32x256xf32>
      %82 = arith.addf %79, %81 : vector<32x256xf32>
      %83 = arith.truncf %82 : vector<32x256xf32> to vector<32x256xbf16>
      %c0_54 = arith.constant 0 : index
      %c0_55 = arith.constant 0 : index
      %84 = vector.load %arg17[%c0_54, %c0_55] : memref<32x256xbf16, #tpu.memory_space<vmem>>, vector<32x256xbf16>
      tpu.vector_store %arg17[%c0_54, %c0_55], %83 {strides = array<i32>} : memref<32x256xbf16, #tpu.memory_space<vmem>>, vector<32x256xbf16>,
    } else {
    }
    %c128_i32 = arith.constant 128 : i32
    %3 = arith.muli %arg1, %c128_i32 : i32
    %4 = tpu.assume_multiple %3, 128 : i32
    %c0 = arith.constant 0 : index
    %5 = arith.index_cast %4 : i32 to index
    %6 = vector.load %arg15[%c0, %5] : memref<32x256xbf16, #tpu.memory_space<vmem>>, vector<32x128xbf16>
    %c0_1 = arith.constant 0 : index
    %c0_2 = arith.constant 0 : index
    %7 = vector.load %arg16[%c0_1, %c0_2] : memref<32x256xbf16, #tpu.memory_space<vmem>>, vector<32x256xbf16>
    %cst = arith.constant dense<0.000000e+00> : vector<128x256xf32>
    %8 = tpu.matmul %6, %7, %cst {dimension_numbers = #tpu.dot_dimension_numbers<[0], [0], [1], [1], [0, 1, 1, 1], [], []>} : vector<32x128xbf16>, vector<32x256xbf16>, vector<128x256xf32> -> vector<128x256xf32>
    %cst_3 = arith.constant dense<0xFF800000> : vector<128xf32>
    %9 = vector.multi_reduction <maximumf>, %8, %cst_3 [1] : vector<128x256xf32> to vector<128xf32>
    %10 = vector.shape_cast %9 : vector<128xf32> to vector<128x1xf32>
    %11 = vector.broadcast %10 : vector<128x1xf32> to vector<128x256xf32>
    %12 = arith.subf %8, %11 : vector<128x256xf32>
    %13 = math.exp %12 : vector<128x256xf32>
    %14 = arith.truncf %13 : vector<128x256xf32> to vector<128x256xbf16>
    %cst_4 = arith.constant 1.000000e+00 : f32
    %15 = vector.broadcast %cst_4 : f32 to vector<1x256xf32>
    %cst_5 = arith.constant dense<0.000000e+00> : vector<1x128xf32>
    %16 = tpu.matmul %15, %13, %cst_5 {dimension_numbers = #tpu.dot_dimension_numbers<[1], [1], [0], [0], [0, 0, 1, 0], [], []>} : vector<1x256xf32>, vector<128x256xf32>, vector<1x128xf32> -> vector<1x128xf32>
    %17 = tpu.reciprocal %16 {approx = true} : vector<1x128xf32> -> vector<1x128xf32>
    %c0_6 = arith.constant 0 : index
    %c0_7 = arith.constant 0 : index
    %18 = vector.load %arg17[%c0_6, %c0_7] : memref<32x256xbf16, #tpu.memory_space<vmem>>, vector<32x256xbf16>
    %cst_8 = arith.constant dense<0.000000e+00> : vector<32x128xf32>
    %19 = tpu.matmul %18, %14, %cst_8 {dimension_numbers = #tpu.dot_dimension_numbers<[1], [1], [0], [0], [0, 0, 1, 0], [], []>} : vector<32x256xbf16>, vector<128x256xbf16>, vector<32x128xf32> -> vector<32x128xf32>
    %20 = vector.broadcast %17 : vector<1x128xf32> to vector<32x128xf32>
    %21 = arith.mulf %19, %20 : vector<32x128xf32>
    %22 = arith.truncf %21 : vector<32x128xf32> to vector<32x128xbf16>
    %c0_9 = arith.constant 0 : index
    %c0_10 = arith.constant 0 : index
    %23 = vector.load %arg12[%c0_9, %c0_10] : memref<32x32xbf16, #tpu.memory_space<vmem>>, vector<32x32xbf16>
    %cst_11 = arith.constant dense<0.000000e+00> : vector<32x128xf32>
    %24 = tpu.matmul %23, %22, %cst_11 {dimension_numbers = #tpu.dot_dimension_numbers<[1], [0], [0], [1], [0, 0, 1, 1], [], []>} : vector<32x32xbf16>, vector<32x128xbf16>, vector<32x128xf32> -> vector<32x128xf32>
    %c0_12 = arith.constant 0 : index
    %c0_13 = arith.constant 0 : index
    %25 = vector.load %arg13[%c0_12, %c0_13] : memref<32x1xf32, #tpu.memory_space<vmem>>, vector<32x1xf32>
    %26 = vector.broadcast %25 : vector<32x1xf32> to vector<32x128xf32>
    %27 = arith.addf %24, %26 : vector<32x128xf32>
    %c0_14 = arith.constant 0 : index
    %c0_15 = arith.constant 0 : index
    %28 = arith.index_cast %4 : i32 to index
    %29 = vector.load %arg2[%c0_14, %c0_15, %28] : memref<1x32x256xf32, #tpu.memory_space<vmem>>, vector<1x32x128xf32>
    %30 = vector.shape_cast %29 : vector<1x32x128xf32> to vector<32x128xf32>
    %31 = arith.addf %30, %27 : vector<32x128xf32>
    %c0_16 = arith.constant 0 : index
    %c0_17 = arith.constant 0 : index
    %c0_18 = arith.constant 0 : index
    %32 = vector.load %arg14[%c0_16, %c0_17, %c0_18] : memref<1x32x128xf32, #tpu.memory_space<vmem>>, vector<1x32x128xf32>
    %33 = vector.shape_cast %32 : vector<1x32x128xf32> to vector<32x128xf32>
    %34 = vector.shape_cast %31 : vector<32x128xf32> to vector<1x32x128xf32>
    tpu.vector_store %arg14[%c0_16, %c0_17, %c0_18], %34 {strides = array<i32>} : memref<1x32x128xf32, #tpu.memory_space<vmem>>, vector<1x32x128xf32>,
    return
  }
  func.func @transform_0(%arg0: i32, %arg1: i32) -> (i32, i32, i32) {
    %c0_i32 = arith.constant 0 : i32
    %c0_i32_0 = arith.constant 0 : i32
    %c0_i32_1 = arith.constant 0 : i32
    return %arg0, %c0_i32, %c0_i32_0 : i32, i32, i32
  }
  func.func @transform_1(%arg0: i32, %arg1: i32) -> (i32, i32) {
    %c0_i32 = arith.constant 0 : i32
    %c0_i32_0 = arith.constant 0 : i32
    %c0_i32_1 = arith.constant 0 : i32
    return %c0_i32, %c0_i32_0 : i32, i32
  }
  func.func @transform_2(%arg0: i32, %arg1: i32) -> (i32, i32) {
    %c0_i32 = arith.constant 0 : i32
    %c0_i32_0 = arith.constant 0 : i32
    %c0_i32_1 = arith.constant 0 : i32
    return %c0_i32, %c0_i32_0 : i32, i32
  }
  func.func @transform_3(%arg0: i32, %arg1: i32) -> (i32, i32) {
    %c0_i32 = arith.constant 0 : i32
    %c0_i32_0 = arith.constant 0 : i32
    %c0_i32_1 = arith.constant 0 : i32
    return %c0_i32, %c0_i32_0 : i32, i32
  }
  func.func @transform_4(%arg0: i32, %arg1: i32) -> (i32, i32) {
    %c0_i32 = arith.constant 0 : i32
    %c0_i32_0 = arith.constant 0 : i32
    %c0_i32_1 = arith.constant 0 : i32
    return %c0_i32, %c0_i32_0 : i32, i32
  }
  func.func @transform_5(%arg0: i32, %arg1: i32) -> (i32, i32) {
    %c0_i32 = arith.constant 0 : i32
    %c0_i32_0 = arith.constant 0 : i32
    %c0_i32_1 = arith.constant 0 : i32
    return %c0_i32, %c0_i32_0 : i32, i32
  }
  func.func @transform_6(%arg0: i32, %arg1: i32) -> (i32, i32) {
    %c0_i32 = arith.constant 0 : i32
    %c0_i32_0 = arith.constant 0 : i32
    %c0_i32_1 = arith.constant 0 : i32
    return %c0_i32, %c0_i32_0 : i32, i32
  }
  func.func @transform_7(%arg0: i32, %arg1: i32) -> (i32, i32) {
    %c0_i32 = arith.constant 0 : i32
    %c0_i32_0 = arith.constant 0 : i32
    %c0_i32_1 = arith.constant 0 : i32
    return %c0_i32, %c0_i32_0 : i32, i32
  }
  func.func @transform_8(%arg0: i32, %arg1: i32) -> (i32, i32) {
    %c0_i32 = arith.constant 0 : i32
    %c0_i32_0 = arith.constant 0 : i32
    %c0_i32_1 = arith.constant 0 : i32
    return %c0_i32, %c0_i32_0 : i32, i32
  }
  func.func @transform_9(%arg0: i32, %arg1: i32) -> (i32, i32) {
    %c0_i32 = arith.constant 0 : i32
    %c0_i32_0 = arith.constant 0 : i32
    %c0_i32_1 = arith.constant 0 : i32
    return %c0_i32, %c0_i32_0 : i32, i32
  }
  func.func @transform_10(%arg0: i32, %arg1: i32) -> (i32, i32) {
    %c0_i32 = arith.constant 0 : i32
    %c0_i32_0 = arith.constant 0 : i32
    %c0_i32_1 = arith.constant 0 : i32
    return %c0_i32, %c0_i32_0 : i32, i32
  }
  func.func @transform_11(%arg0: i32, %arg1: i32) -> (i32, i32) {
    %c0_i32 = arith.constant 0 : i32
    %c0_i32_0 = arith.constant 0 : i32
    %c0_i32_1 = arith.constant 0 : i32
    return %c0_i32, %c0_i32_0 : i32, i32
  }
  func.func @transform_12(%arg0: i32, %arg1: i32) -> (i32, i32, i32) {
    %c0_i32 = arith.constant 0 : i32
    %c0_i32_0 = arith.constant 0 : i32
    return %arg0, %c0_i32, %arg1 : i32, i32, i32
  }
}

</mosaic_0001>

<llo_original>
// kernel: tpu_custom_call.1
$region0: #{tpu_custom_call.1}
  #allocation0 [shape = 'u32[]', space=smem, size = 0x4, offset = 0x4, fixed_abs, tag = 'smem constant byte address 0x4 - core index']
  #allocation1 [shape = 'u32[144,128]{1,0:T(1,128)}', space=vmem, size = 0x12000, scoped, tag = 'internal scratch']
  #allocation2 [shape = 'bf16[32,256]{1,0:T(16,128)(2,1)}', space=vmem, size = 0x4000, scoped, tag = 'scratch operand']
  #allocation3 [shape = 'bf16[32,256]{1,0:T(16,128)(2,1)}', space=vmem, size = 0x4000, scoped, tag = 'scratch operand']
  #allocation4 [shape = 'bf16[32,256]{1,0:T(16,128)(2,1)}', space=vmem, size = 0x4000, scoped, tag = 'scratch operand']
  %s0 = inlined_call_operand.vmem [shape: f32[2,32,256], index: 0, kind: input, shape index: {}]
  %s1 = inlined_call_operand.vmem [shape: f32[32,32], index: 1, kind: input, shape index: {}]
  %s2 = inlined_call_operand.vmem [shape: f32[32,1], index: 2, kind: input, shape index: {}]
  %s3 = inlined_call_operand.vmem [shape: f32[32,1], index: 3, kind: input, shape index: {}]
  %s4 = inlined_call_operand.vmem [shape: bf16[32,32], index: 4, kind: input, shape index: {}]
  %s5 = inlined_call_operand.vmem [shape: f32[32,1], index: 5, kind: input, shape index: {}]
  %s6 = inlined_call_operand.vmem [shape: bf16[32,32], index: 6, kind: input, shape index: {}]
  %s7 = inlined_call_operand.vmem [shape: f32[32,1], index: 7, kind: input, shape index: {}]
  %s8 = inlined_call_operand.vmem [shape: bf16[32,32], index: 8, kind: input, shape index: {}]
  %s9 = inlined_call_operand.vmem [shape: f32[32,1], index: 9, kind: input, shape index: {}]
  %s10 = inlined_call_operand.vmem [shape: bf16[32,32], index: 10, kind: input, shape index: {}]
  %s11 = inlined_call_operand.vmem [shape: f32[32,1], index: 11, kind: input, shape index: {}]
  %s12 = inlined_call_operand.hbm [shape: f32[2,32,256], index: 12, kind: output, shape index: {}]
  %s13 = sld [smem:[#allocation0]]
  $region85: #{tpu_custom_call.1} parent=0
    _
  %s15 = ssub.s32 1, %s13
  %s16 = scalar_select 0, %s15, %s13
  $region1: #{tpu_custom_call.1} parent=0
    #allocation5 [shape = 'u8[32768]{0}', space=vmem, size = 0x8000, scoped, tag = 'output window, operand 0']
    #allocation6 [shape = 's32[2]{0}', space=sflag, size = 0x8, scoped, tag = 'scoped memory for tpu_custom_call.1']
    %17 = vsyncpa [#allocation6], 0
    %s18 = scalar_lea.sflag [#allocation6], 1
    %19 = vsyncpa %s18, 0
    loop: start=0, step=1, limit=6
    $region2: #{tpu_custom_call.1} parent=1 // loop_pre_header
      _
    $region3: #{tpu_custom_call.1} parent=1 // loop_header
      %s21 = sphi 0, %s25
      %p22 = scmp.ge.s32.totalorder %s21, 6
      %s28 = sphi 0, %s40
      %s29 = sphi 0, %s36
      %s30 = sphi 0, %s28
      %s31 = sphi 0, %s29
      %s32 = sphi 0, %s30
      %s33 = sphi 0, %s31
      %s43 = sphi 0, %s45
      %s46 = sphi 0, %s43
      %s47 = sphi 0, %s46
      %s63 = sphi 0, %s47
      %s67 = sphi 0, %s67
      %s69 = sphi 0, %s67
      %s70 = sphi 0, %s69
      %s84 = sphi 0, %s70
      %s88 = sphi 0, %s88
      %s90 = sphi 0, %s88
      %s91 = sphi 0, %s90
      %s105 = sphi 0, %s91
      %s109 = sphi 0, %s109
      %s111 = sphi 0, %s109
      %s112 = sphi 0, %s111
      %s126 = sphi 0, %s112
      %s130 = sphi 0, %s130
      %s132 = sphi 0, %s130
      %s133 = sphi 0, %s132
      %s147 = sphi 0, %s133
      %s151 = sphi 0, %s151
      %s153 = sphi 0, %s151
      %s154 = sphi 0, %s153
      %s168 = sphi 0, %s154
      %s172 = sphi 0, %s172
      %s174 = sphi 0, %s172
      %s175 = sphi 0, %s174
      %s189 = sphi 0, %s175
      %s193 = sphi 0, %s193
      %s195 = sphi 0, %s193
      %s196 = sphi 0, %s195
      %s210 = sphi 0, %s196
      %s214 = sphi 0, %s214
      %s216 = sphi 0, %s214
      %s217 = sphi 0, %s216
      %s231 = sphi 0, %s217
      %s235 = sphi 0, %s235
      %s237 = sphi 0, %s235
      %s238 = sphi 0, %s237
      %s252 = sphi 0, %s238
      %s256 = sphi 0, %s256
      %s258 = sphi 0, %s256
      %s259 = sphi 0, %s258
      %s273 = sphi 0, %s259
      %s277 = sphi 0, %s277
      %s279 = sphi 0, %s277
      %s280 = sphi 0, %s279
      %s294 = sphi 0, %s280
      %s302 = sphi 0, %s304
      %s305 = sphi 0, %s302
      %s306 = sphi 0, %s305
      %s322 = sphi 0, %s306
    $region4: #{tpu_custom_call.1} parent=1 // loop_header_branch
      %24 = sbr.rel (%p22) target = $region8
    $region5: #{tpu_custom_call.1} parent=1 // loop_body
      %s26 = ssub.s32 %s21, 1
      %s27 = ssub.s32 %s21, 2
      %s34 = sadd.s32 1, %s29
      %p35 = scmp.ge.s32.totalorder %s34, 2
      %s36 = scalar_select %p35, 0, %s34
      %s37 = sadd.s32 1, %s28
      %s38 = scalar_select %p35, %s37, %s28
      %p39 = scmp.ge.s32.totalorder %s38, 2
      %s40 = scalar_select %p39, 0, %s38
      %s41 = ssub.s32 %s28, %s40
      %p42 = scmp.eq.s32.totalorder %s41, 0
      %s44 = sadd.s32 %s43, 1
      %s45 = scalar_select %p42, %s43, %s44
      %p48 = pneg %p42
      %p49 = scmp.eq.s32.totalorder %s21, 3
      %p50 = por %p48, %p49
      %p51 = scmp.ne.s32.totalorder %s43, %s46
      %p52 = scmp.eq.s32.totalorder %s21, 0
      %p53 = por %p51, %p52
      %p54 = scmp.ne.s32.totalorder %s43, %s46
      %p55 = scmp.eq.s32.totalorder %s26, 3
      %p56 = por %p54, %p55
      %p57 = scmp.ne.s32.totalorder %s46, %s47
      %p58 = scmp.eq.s32.totalorder %s26, 0
      %p59 = por %p57, %p58
      %p60 = scmp.ne.s32.totalorder %s46, %s47
      %p61 = scmp.eq.s32.totalorder %s27, 3
      %p62 = por %p60, %p61
      %p64 = scmp.ne.s32.totalorder %s47, %s63
      %p65 = scmp.eq.s32.totalorder %s27, 0
      %p66 = por %p64, %p65
      %s68 = sadd.s32 %s67, 1
      %p71 = scmp.eq.s32.totalorder %s21, 3
      %p72 = scmp.ne.s32.totalorder %s67, %s69
      %p73 = scmp.eq.s32.totalorder %s21, 0
      %p74 = por %p72, %p73
      %p75 = scmp.ne.s32.totalorder %s67, %s69
      %p76 = scmp.eq.s32.totalorder %s26, 3
      %p77 = por %p75, %p76
      %p78 = scmp.ne.s32.totalorder %s69, %s70
      %p79 = scmp.eq.s32.totalorder %s26, 0
      %p80 = por %p78, %p79
      %p81 = scmp.ne.s32.totalorder %s69, %s70
      %p82 = scmp.eq.s32.totalorder %s27, 3
      %p83 = por %p81, %p82
      %p85 = scmp.ne.s32.totalorder %s70, %s84
      %p86 = scmp.eq.s32.totalorder %s27, 0
      %p87 = por %p85, %p86
      %s89 = sadd.s32 %s88, 1
      %p92 = scmp.eq.s32.totalorder %s21, 3
      %p93 = scmp.ne.s32.totalorder %s88, %s90
      %p94 = scmp.eq.s32.totalorder %s21, 0
      %p95 = por %p93, %p94
      %p96 = scmp.ne.s32.totalorder %s88, %s90
      %p97 = scmp.eq.s32.totalorder %s26, 3
      %p98 = por %p96, %p97
      %p99 = scmp.ne.s32.totalorder %s90, %s91
      %p100 = scmp.eq.s32.totalorder %s26, 0
      %p101 = por %p99, %p100
      %p102 = scmp.ne.s32.totalorder %s90, %s91
      %p103 = scmp.eq.s32.totalorder %s27, 3
      %p104 = por %p102, %p103
      %p106 = scmp.ne.s32.totalorder %s91, %s105
      %p107 = scmp.eq.s32.totalorder %s27, 0
      %p108 = por %p106, %p107
      %s110 = sadd.s32 %s109, 1
      %p113 = scmp.eq.s32.totalorder %s21, 3
      %p114 = scmp.ne.s32.totalorder %s109, %s111
      %p115 = scmp.eq.s32.totalorder %s21, 0
      %p116 = por %p114, %p115
      %p117 = scmp.ne.s32.totalorder %s109, %s111
      %p118 = scmp.eq.s32.totalorder %s26, 3
      %p119 = por %p117, %p118
      %p120 = scmp.ne.s32.totalorder %s111, %s112
      %p121 = scmp.eq.s32.totalorder %s26, 0
      %p122 = por %p120, %p121
      %p123 = scmp.ne.s32.totalorder %s111, %s112
      %p124 = scmp.eq.s32.totalorder %s27, 3
      %p125 = por %p123, %p124
      %p127 = scmp.ne.s32.totalorder %s112, %s126
      %p128 = scmp.eq.s32.totalorder %s27, 0
      %p129 = por %p127, %p128
      %s131 = sadd.s32 %s130, 1
      %p134 = scmp.eq.s32.totalorder %s21, 3
      %p135 = scmp.ne.s32.totalorder %s130, %s132
      %p136 = scmp.eq.s32.totalorder %s21, 0
      %p137 = por %p135, %p136
      %p138 = scmp.ne.s32.totalorder %s130, %s132
      %p139 = scmp.eq.s32.totalorder %s26, 3
      %p140 = por %p138, %p139
      %p141 = scmp.ne.s32.totalorder %s132, %s133
      %p142 = scmp.eq.s32.totalorder %s26, 0
      %p143 = por %p141, %p142
      %p144 = scmp.ne.s32.totalorder %s132, %s133
      %p145 = scmp.eq.s32.totalorder %s27, 3
      %p146 = por %p144, %p145
      %p148 = scmp.ne.s32.totalorder %s133, %s147
      %p149 = scmp.eq.s32.totalorder %s27, 0
      %p150 = por %p148, %p149
      %s152 = sadd.s32 %s151, 1
      %p155 = scmp.eq.s32.totalorder %s21, 3
      %p156 = scmp.ne.s32.totalorder %s151, %s153
      %p157 = scmp.eq.s32.totalorder %s21, 0
      %p158 = por %p156, %p157
      %p159 = scmp.ne.s32.totalorder %s151, %s153
      %p160 = scmp.eq.s32.totalorder %s26, 3
      %p161 = por %p159, %p160
      %p162 = scmp.ne.s32.totalorder %s153, %s154
      %p163 = scmp.eq.s32.totalorder %s26, 0
      %p164 = por %p162, %p163
      %p165 = scmp.ne.s32.totalorder %s153, %s154
      %p166 = scmp.eq.s32.totalorder %s27, 3
      %p167 = por %p165, %p166
      %p169 = scmp.ne.s32.totalorder %s154, %s168
      %p170 = scmp.eq.s32.totalorder %s27, 0
      %p171 = por %p169, %p170
      %s173 = sadd.s32 %s172, 1
      %p176 = scmp.eq.s32.totalorder %s21, 3
      %p177 = scmp.ne.s32.totalorder %s172, %s174
      %p178 = scmp.eq.s32.totalorder %s21, 0
      %p179 = por %p177, %p178
      %p180 = scmp.ne.s32.totalorder %s172, %s174
      %p181 = scmp.eq.s32.totalorder %s26, 3
      %p182 = por %p180, %p181
      %p183 = scmp.ne.s32.totalorder %s174, %s175
      %p184 = scmp.eq.s32.totalorder %s26, 0
      %p185 = por %p183, %p184
      %p186 = scmp.ne.s32.totalorder %s174, %s175
      %p187 = scmp.eq.s32.totalorder %s27, 3
      %p188 = por %p186, %p187
      %p190 = scmp.ne.s32.totalorder %s175, %s189
      %p191 = scmp.eq.s32.totalorder %s27, 0
      %p192 = por %p190, %p191
      %s194 = sadd.s32 %s193, 1
      %p197 = scmp.eq.s32.totalorder %s21, 3
      %p198 = scmp.ne.s32.totalorder %s193, %s195
      %p199 = scmp.eq.s32.totalorder %s21, 0
      %p200 = por %p198, %p199
      %p201 = scmp.ne.s32.totalorder %s193, %s195
      %p202 = scmp.eq.s32.totalorder %s26, 3
      %p203 = por %p201, %p202
      %p204 = scmp.ne.s32.totalorder %s195, %s196
      %p205 = scmp.eq.s32.totalorder %s26, 0
      %p206 = por %p204, %p205
      %p207 = scmp.ne.s32.totalorder %s195, %s196
      %p208 = scmp.eq.s32.totalorder %s27, 3
      %p209 = por %p207, %p208
      %p211 = scmp.ne.s32.totalorder %s196, %s210
      %p212 = scmp.eq.s32.totalorder %s27, 0
      %p213 = por %p211, %p212
      %s215 = sadd.s32 %s214, 1
      %p218 = scmp.eq.s32.totalorder %s21, 3
      %p219 = scmp.ne.s32.totalorder %s214, %s216
      %p220 = scmp.eq.s32.totalorder %s21, 0
      %p221 = por %p219, %p220
      %p222 = scmp.ne.s32.totalorder %s214, %s216
      %p223 = scmp.eq.s32.totalorder %s26, 3
      %p224 = por %p222, %p223
      %p225 = scmp.ne.s32.totalorder %s216, %s217
      %p226 = scmp.eq.s32.totalorder %s26, 0
      %p227 = por %p225, %p226
      %p228 = scmp.ne.s32.totalorder %s216, %s217
      %p229 = scmp.eq.s32.totalorder %s27, 3
      %p230 = por %p228, %p229
      %p232 = scmp.ne.s32.totalorder %s217, %s231
      %p233 = scmp.eq.s32.totalorder %s27, 0
      %p234 = por %p232, %p233
      %s236 = sadd.s32 %s235, 1
      %p239 = scmp.eq.s32.totalorder %s21, 3
      %p240 = scmp.ne.s32.totalorder %s235, %s237
      %p241 = scmp.eq.s32.totalorder %s21, 0
      %p242 = por %p240, %p241
      %p243 = scmp.ne.s32.totalorder %s235, %s237
      %p244 = scmp.eq.s32.totalorder %s26, 3
      %p245 = por %p243, %p244
      %p246 = scmp.ne.s32.totalorder %s237, %s238
      %p247 = scmp.eq.s32.totalorder %s26, 0
      %p248 = por %p246, %p247
      %p249 = scmp.ne.s32.totalorder %s237, %s238
      %p250 = scmp.eq.s32.totalorder %s27, 3
      %p251 = por %p249, %p250
      %p253 = scmp.ne.s32.totalorder %s238, %s252
      %p254 = scmp.eq.s32.totalorder %s27, 0
      %p255 = por %p253, %p254
      %s257 = sadd.s32 %s256, 1
      %p260 = scmp.eq.s32.totalorder %s21, 3
      %p261 = scmp.ne.s32.totalorder %s256, %s258
      %p262 = scmp.eq.s32.totalorder %s21, 0
      %p263 = por %p261, %p262
      %p264 = scmp.ne.s32.totalorder %s256, %s258
      %p265 = scmp.eq.s32.totalorder %s26, 3
      %p266 = por %p264, %p265
      %p267 = scmp.ne.s32.totalorder %s258, %s259
      %p268 = scmp.eq.s32.totalorder %s26, 0
      %p269 = por %p267, %p268
      %p270 = scmp.ne.s32.totalorder %s258, %s259
      %p271 = scmp.eq.s32.totalorder %s27, 3
      %p272 = por %p270, %p271
      %p274 = scmp.ne.s32.totalorder %s259, %s273
      %p275 = scmp.eq.s32.totalorder %s27, 0
      %p276 = por %p274, %p275
      %s278 = sadd.s32 %s277, 1
      %p281 = scmp.eq.s32.totalorder %s21, 3
      %p282 = scmp.ne.s32.totalorder %s277, %s279
      %p283 = scmp.eq.s32.totalorder %s21, 0
      %p284 = por %p282, %p283
      %p285 = scmp.ne.s32.totalorder %s277, %s279
      %p286 = scmp.eq.s32.totalorder %s26, 3
      %p287 = por %p285, %p286
      %p288 = scmp.ne.s32.totalorder %s279, %s280
      %p289 = scmp.eq.s32.totalorder %s26, 0
      %p290 = por %p288, %p289
      %p291 = scmp.ne.s32.totalorder %s279, %s280
      %p292 = scmp.eq.s32.totalorder %s27, 3
      %p293 = por %p291, %p292
      %p295 = scmp.ne.s32.totalorder %s280, %s294
      %p296 = scmp.eq.s32.totalorder %s27, 0
      %p297 = por %p295, %p296
      %s298 = ssub.s32 %s28, %s40
      %s299 = ssub.s32 %s29, %s36
      %s300 = sor.u32 %s298, %s299
      %p301 = scmp.eq.s32.totalorder %s300, 0
      %s303 = sadd.s32 %s302, 1
      %s304 = scalar_select %p301, %s302, %s303
      %p307 = pneg %p301
      %p308 = scmp.eq.s32.totalorder %s21, 3
      %p309 = por %p307, %p308
      %p310 = scmp.ne.s32.totalorder %s302, %s305
      %p311 = scmp.eq.s32.totalorder %s21, 0
      %p312 = por %p310, %p311
      %p313 = scmp.ne.s32.totalorder %s302, %s305
      %p314 = scmp.eq.s32.totalorder %s26, 3
      %p315 = por %p313, %p314
      %p316 = scmp.ne.s32.totalorder %s305, %s306
      %p317 = scmp.eq.s32.totalorder %s26, 0
      %p318 = por %p316, %p317
      %p319 = scmp.ne.s32.totalorder %s305, %s306
      %p320 = scmp.eq.s32.totalorder %s27, 3
      %p321 = por %p319, %p320
      %p323 = scmp.ne.s32.totalorder %s306, %s322
      %p324 = scmp.eq.s32.totalorder %s27, 0
      %p325 = por %p323, %p324
      %p326 = scmp.le.s32.totalorder 1, %s21
      %p327 = scmp.lt.s32.totalorder %s21, 5
      %p328 = pnand %p326, %p327
      %p329 = pneg %p328
      // Predicated region
      $region9: #{tpu_custom_call.1} parent=5 // pred_check
        _
      $region10: #{tpu_custom_call.1} parent=5 // pred_check_branch
        %331 = sbr.rel (%p328) target = $region12
      $region11: #{tpu_custom_call.1} parent=5 // pred_region
        %s332 = ssub.s32 %s21, 1
        // Predicated region
        $region13: #{tpu_custom_call.1} parent=11 // pred_check
          %p333 = pneg %p80
        $region14: #{tpu_custom_call.1} parent=11 // pred_check_branch
          %335 = sbr.rel (%p333) target = $region16
        $region15: #{tpu_custom_call.1} parent=11 // pred_region
          _
        $region16: #{tpu_custom_call.1} parent=11 // pred_fallthru
          _
        // Predicated region
        $region17: #{tpu_custom_call.1} parent=11 // pred_check
          %p336 = pneg %p101
        $region18: #{tpu_custom_call.1} parent=11 // pred_check_branch
          %338 = sbr.rel (%p336) target = $region20
        $region19: #{tpu_custom_call.1} parent=11 // pred_region
          _
        $region20: #{tpu_custom_call.1} parent=11 // pred_fallthru
          _
        // Predicated region
        $region21: #{tpu_custom_call.1} parent=11 // pred_check
          %p339 = pneg %p122
        $region22: #{tpu_custom_call.1} parent=11 // pred_check_branch
          %341 = sbr.rel (%p339) target = $region24
        $region23: #{tpu_custom_call.1} parent=11 // pred_region
          _
        $region24: #{tpu_custom_call.1} parent=11 // pred_fallthru
          _
        // Predicated region
        $region25: #{tpu_custom_call.1} parent=11 // pred_check
          %p342 = pneg %p143
        $region26: #{tpu_custom_call.1} parent=11 // pred_check_branch
          %344 = sbr.rel (%p342) target = $region28
        $region27: #{tpu_custom_call.1} parent=11 // pred_region
          _
        $region28: #{tpu_custom_call.1} parent=11 // pred_fallthru
          _
        // Predicated region
        $region29: #{tpu_custom_call.1} parent=11 // pred_check
          %p345 = pneg %p164
        $region30: #{tpu_custom_call.1} parent=11 // pred_check_branch
          %347 = sbr.rel (%p345) target = $region32
        $region31: #{tpu_custom_call.1} parent=11 // pred_region
          _
        $region32: #{tpu_custom_call.1} parent=11 // pred_fallthru
          _
        // Predicated region
        $region33: #{tpu_custom_call.1} parent=11 // pred_check
          %p348 = pneg %p185
        $region34: #{tpu_custom_call.1} parent=11 // pred_check_branch
          %350 = sbr.rel (%p348) target = $region36
        $region35: #{tpu_custom_call.1} parent=11 // pred_region
          _
        $region36: #{tpu_custom_call.1} parent=11 // pred_fallthru
          _
        // Predicated region
        $region37: #{tpu_custom_call.1} parent=11 // pred_check
          %p351 = pneg %p206
        $region38: #{tpu_custom_call.1} parent=11 // pred_check_branch
          %353 = sbr.rel (%p351) target = $region40
        $region39: #{tpu_custom_call.1} parent=11 // pred_region
          _
        $region40: #{tpu_custom_call.1} parent=11 // pred_fallthru
          _
        // Predicated region
        $region41: #{tpu_custom_call.1} parent=11 // pred_check
          %p354 = pneg %p227
        $region42: #{tpu_custom_call.1} parent=11 // pred_check_branch
          %356 = sbr.rel (%p354) target = $region44
        $region43: #{tpu_custom_call.1} parent=11 // pred_region
          _
        $region44: #{tpu_custom_call.1} parent=11 // pred_fallthru
          _
        // Predicated region
        $region45: #{tpu_custom_call.1} parent=11 // pred_check
          %p357 = pneg %p248
        $region46: #{tpu_custom_call.1} parent=11 // pred_check_branch
          %359 = sbr.rel (%p357) target = $region48
        $region47: #{tpu_custom_call.1} parent=11 // pred_region
          _
        $region48: #{tpu_custom_call.1} parent=11 // pred_fallthru
          _
        // Predicated region
        $region49: #{tpu_custom_call.1} parent=11 // pred_check
          %p360 = pneg %p269
        $region50: #{tpu_custom_call.1} parent=11 // pred_check_branch
          %362 = sbr.rel (%p360) target = $region52
        $region51: #{tpu_custom_call.1} parent=11 // pred_region
          _
        $region52: #{tpu_custom_call.1} parent=11 // pred_fallthru
          _
        // Predicated region
        $region53: #{tpu_custom_call.1} parent=11 // pred_check
          %p363 = pneg %p290
        $region54: #{tpu_custom_call.1} parent=11 // pred_check_branch
          %365 = sbr.rel (%p363) target = $region56
        $region55: #{tpu_custom_call.1} parent=11 // pred_region
          _
        $region56: #{tpu_custom_call.1} parent=11 // pred_fallthru
          _
      $region12: #{tpu_custom_call.1} parent=5 // pred_fallthru
        _
      %p366 = scmp.lt.s32.totalorder %s21, 4
      // Predicated region
      $region57: #{tpu_custom_call.1} parent=5 // pred_check
        %p367 = pneg %p366
      $region58: #{tpu_custom_call.1} parent=5 // pred_check_branch
        %369 = sbr.rel (%p367) target = $region60
      $region59: #{tpu_custom_call.1} parent=5 // pred_region
        // Predicated region
        $region61: #{tpu_custom_call.1} parent=59 // pred_check
          %p370 = pneg %p53
        $region62: #{tpu_custom_call.1} parent=59 // pred_check_branch
          %372 = sbr.rel (%p370) target = $region64
        $region63: #{tpu_custom_call.1} parent=59 // pred_region
          %p373 = scmp.lt.s32.totalorder %s28, 1
          %s374 = scalar_select %p373, %s28, 1
          %s375 = smul.addr %s374, 8
          %s376 = smul.addr %s375, 8
          %s377 = scalar_lea.vmem %s0, %s376
        $region64: #{tpu_custom_call.1} parent=59 // pred_fallthru
          _
      $region60: #{tpu_custom_call.1} parent=5 // pred_fallthru
        _
      %p378 = scmp.le.s32.totalorder 1, %s21
      %p379 = scmp.lt.s32.totalorder %s21, 5
      %p380 = pnand %p378, %p379
      %p381 = pneg %p380
      // Predicated region
      $region65: #{tpu_custom_call.1} parent=5 // pred_check
        _
      $region66: #{tpu_custom_call.1} parent=5 // pred_check_branch
        %383 = sbr.rel (%p380) target = $region68
      $region67: #{tpu_custom_call.1} parent=5 // pred_region
        %s384 = ssub.s32 %s21, 1
        %p385 = scmp.lt.s32.totalorder %s30, 1
        %s386 = scalar_select %p385, %s30, 1
        %s387 = smul.addr %s386, 8
        %s388 = smul.addr %s387, 8
        %s389 = scalar_lea.vmem %s0, %s388
        %p390 = pneg %p59
        %p391 = pneg %p56
        %p392 = pneg %p80
        %p393 = pneg %p77
        %p394 = pneg %p101
        %p395 = pneg %p98
        %p396 = pneg %p122
        %p397 = pneg %p119
        %p398 = pneg %p143
        %p399 = pneg %p140
        %p400 = pneg %p164
        %p401 = pneg %p161
        %p402 = pneg %p185
        %p403 = pneg %p182
        %p404 = pneg %p206
        %p405 = pneg %p203
        %p406 = pneg %p227
        %p407 = pneg %p224
        %p408 = pneg %p248
        %p409 = pneg %p245
        %p410 = pneg %p269
        %p411 = pneg %p266
        %p412 = pneg %p290
        %p413 = pneg %p287
        %p414 = pneg %p318
        %p415 = pneg %p315
        %s416 = sand.u32 %s305, 1
        %s417 = scalar_lea.sflag [#allocation6], %s416
        %s418 = sand.u32 %s305, 1
        %s419 = smul.addr %s418, 32
        %s420 = scalar_lea.vmem [#allocation5], %s419
        %p421 = scmp.lt.s32.totalorder %s30, 1
        %s422 = scalar_select %p421, %s30, 1
        %s423 = smul.addr %s422, 8
        %s424 = smul.addr %s423, 8
        %s425 = scalar_lea.vmem %s0, %s424
        %p427 = scmp.eq.s32.totalorder %s31, 0
        // Predicated region
        $region69: #{tpu_custom_call.1} parent=67 // pred_check
          %p428 = pneg %p427
        $region70: #{tpu_custom_call.1} parent=67 // pred_check_branch
          %430 = sbr.rel (%p428) target = $region72
        $region71: #{tpu_custom_call.1} parent=67 // pred_region
          %v431 = vld [vmem:[%s425] sm:$0xff]
          %v432 = vld [vmem:[%s425 + $0x8] sm:$0xff]
          %v433 = vld [vmem:[%s425 + $0x10] sm:$0xff]
          %v434 = vld [vmem:[%s425 + $0x18] sm:$0xff]
          %v435 = vld [vmem:[%s425 + $0x20] sm:$0xff]
          %v436 = vld [vmem:[%s425 + $0x28] sm:$0xff]
          %v437 = vld [vmem:[%s425 + $0x30] sm:$0xff]
          %v438 = vld [vmem:[%s425 + $0x38] sm:$0xff]
          %v439 = vadd.f32 %v431, %v432
          %440 = vadd.xlane.f32.xlu0 %v439
          %v441 = vpop.xlane.xlu0 %440
          %v442 = vadd.f32 %v433, %v434
          %443 = vadd.xlane.f32.xlu0 %v442
          %v444 = vpop.xlane.xlu0 %443
          %v445 = vadd.f32 %v435, %v436
          %446 = vadd.xlane.f32.xlu0 %v445
          %v447 = vpop.xlane.xlu0 %446
          %v448 = vadd.f32 %v437, %v438
          %449 = vadd.xlane.f32.xlu0 %v448
          %v450 = vpop.xlane.xlu0 %449
          %v451 = vmul.f32 %v431, %v431
          %v452 = vmul.f32 %v432, %v432
          %v453 = vmul.f32 %v433, %v433
          %v454 = vmul.f32 %v434, %v434
          %v455 = vmul.f32 %v435, %v435
          %v456 = vmul.f32 %v436, %v436
          %v457 = vmul.f32 %v437, %v437
          %v458 = vmul.f32 %v438, %v438
          %v459 = vadd.f32 %v451, %v452
          %460 = vadd.xlane.f32.xlu0 %v459
          %v461 = vpop.xlane.xlu0 %460
          %v462 = vadd.f32 %v453, %v454
          %463 = vadd.xlane.f32.xlu0 %v462
          %v464 = vpop.xlane.xlu0 %463
          %v465 = vadd.f32 %v455, %v456
          %466 = vadd.xlane.f32.xlu0 %v465
          %v467 = vpop.xlane.xlu0 %466
          %v468 = vadd.f32 %v457, %v458
          %469 = vadd.xlane.f32.xlu0 %v468
          %v470 = vpop.xlane.xlu0 %469
          %v471 = vld [vmem:[%s1] sm:$0xff]
          %v472 = vld [vmem:[%s1 + $0x8] sm:$0xff]
          %v473 = vld [vmem:[%s1 + $0x10] sm:$0xff]
          %v474 = vld [vmem:[%s1 + $0x18] sm:$0xff]
          %vm475 = vcmask 261120
          %v477 = vsel %vm475, %v471, 0
          %v480 = vsel %vm475, %v472, 0
          %v483 = vsel %vm475, %v473, 0
          %v486 = vsel %vm475, %v474, 0
          %488 = vmatprep.subr.mxu0 0.0
          %489 = vmatpush1.msra.mxu0 %v441
          %490 = vmatprep.subr.mxu0 0.0
          %491 = vmatpush1.msra.mxu0 %v444
          %492 = vmatprep.subr.mxu0 0.0
          %493 = vmatpush1.msra.mxu0 %v447
          %494 = vmatprep.subr.mxu0 0.0
          %495 = vmatpush1.msra.mxu0 %v450
          %496 = vmatprep.subr.mxu0 0.0
          %497 = vmatpush1.msra.mxu0 0.0
          %498 = vmatprep.subr.mxu0 0.0
          %499 = vmatpush1.msra.mxu0 0.0
          %500 = vmatprep.subr.mxu0 0.0
          %501 = vmatpush1.msra.mxu0 0.0
          %502 = vmatprep.subr.mxu0 0.0
          %503 = vmatpush1.msra.mxu0 0.0
          %504 = vmatprep.subr.mxu0 0.0
          %505 = vmatpush1.msra.mxu0 0.0
          %506 = vmatprep.subr.mxu0 0.0
          %507 = vmatpush1.msra.mxu0 0.0
          %508 = vmatprep.subr.mxu0 0.0
          %509 = vmatpush1.msra.mxu0 0.0
          %510 = vmatprep.subr.mxu0 0.0
          %511 = vmatpush1.msra.mxu0 0.0
          %512 = vmatprep.subr.mxu0 0.0
          %513 = vmatpush1.msra.mxu0 0.0
          %514 = vmatprep.subr.mxu0 0.0
          %515 = vmatpush1.msra.mxu0 0.0
          %516 = vmatprep.subr.mxu0 0.0
          %517 = vmatpush1.msra.mxu0 0.0
          %518 = vmatprep.subr.mxu0 0.0
          %519 = vmatpush1.msra.mxu0 0.0
          %520 = vmatprep.subr.mxu0 0.0
          %521 = vmatpush1.msra.mxu0 0.0
          %522 = vmatprep.subr.mxu0 0.0
          %523 = vmatpush1.msra.mxu0 0.0
          %524 = vmatprep.subr.mxu0 0.0
          %525 = vmatpush1.msra.mxu0 0.0
          %526 = vmatprep.subr.mxu0 0.0
          %527 = vmatpush1.msra.mxu0 0.0
          %528 = vmatprep.subr.mxu0 0.0
          %529 = vmatpush1.msra.mxu0 0.0
          %530 = vmatprep.subr.mxu0 0.0
          %531 = vmatpush1.msra.mxu0 0.0
          %532 = vmatprep.subr.mxu0 0.0
          %533 = vmatpush1.msra.mxu0 0.0
          %534 = vmatprep.subr.mxu0 0.0
          %535 = vmatpush1.msra.mxu0 0.0
          %536 = vmatprep.subr.mxu0 0.0
          %537 = vmatpush1.msra.mxu0 0.0
          %538 = vmatprep.subr.mxu0 0.0
          %539 = vmatpush1.msra.mxu0 0.0
          %540 = vmatprep.subr.mxu0 0.0
          %541 = vmatpush1.msra.mxu0 0.0
          %542 = vmatprep.subr.mxu0 0.0
          %543 = vmatpush1.msra.mxu0 0.0
          %544 = vmatprep.subr.mxu0 0.0
          %545 = vmatpush1.msra.mxu0 0.0
          %546 = vmatprep.subr.mxu0 0.0
          %547 = vmatpush1.msra.mxu0 0.0
          %548 = vmatprep.subr.mxu0 0.0
          %549 = vmatpush1.msra.mxu0 0.0
          %550 = vmatprep.subr.mxu0 0.0
          %551 = vmatpush1.msra.mxu0 0.0
          %552 = vmatprep.mubr.f32.mxu0 0.0
          %553 = vmatmul.mubr.f32.gmra.mrb[0].mxu0 %v477
          %v554 = vpop.f32.mrb[0].mxu0
          %v555 = vadd.f32 0.0, %v554
          %v556 = vpop.f32.mrb[0].mxu0
          %557 = vmatprep.mubr.f32.mxu0 0.0
          %558 = vmatmul.mubr.f32.gmra.mrb[0].mxu0 %v480
          %v559 = vpop.f32.mrb[0].mxu0
          %v560 = vadd.f32 0.0, %v559
          %v561 = vpop.f32.mrb[0].mxu0
          %562 = vmatprep.mubr.f32.mxu0 0.0
          %563 = vmatmul.mubr.f32.gmra.mrb[0].mxu0 %v483
          %v564 = vpop.f32.mrb[0].mxu0
          %v565 = vadd.f32 0.0, %v564
          %v566 = vpop.f32.mrb[0].mxu0
          %567 = vmatprep.mubr.f32.mxu0 0.0
          %568 = vmatmul.mubr.f32.gmra.mrb[0].mxu0 %v486
          %v569 = vpop.f32.mrb[0].mxu0
          %v570 = vadd.f32 0.0, %v569
          %v571 = vpop.f32.mrb[0].mxu0
          %572 = vdwg.mxu0
          %v573 = vmul.f32 %v555, 0.001953125
          %v574 = vmul.f32 %v560, 0.001953125
          %v575 = vmul.f32 %v565, 0.001953125
          %v576 = vmul.f32 %v570, 0.001953125
          %577 = vmatprep.subr.mxu0 0.0
          %578 = vmatpush1.msra.mxu0 %v461
          %579 = vmatprep.subr.mxu0 0.0
          %580 = vmatpush1.msra.mxu0 %v464
          %581 = vmatprep.subr.mxu0 0.0
          %582 = vmatpush1.msra.mxu0 %v467
          %583 = vmatprep.subr.mxu0 0.0
          %584 = vmatpush1.msra.mxu0 %v470
          %585 = vmatprep.subr.mxu0 0.0
          %586 = vmatpush1.msra.mxu0 0.0
          %587 = vmatprep.subr.mxu0 0.0
          %588 = vmatpush1.msra.mxu0 0.0
          %589 = vmatprep.subr.mxu0 0.0
          %590 = vmatpush1.msra.mxu0 0.0
          %591 = vmatprep.subr.mxu0 0.0
          %592 = vmatpush1.msra.mxu0 0.0
          %593 = vmatprep.subr.mxu0 0.0
          %594 = vmatpush1.msra.mxu0 0.0
          %595 = vmatprep.subr.mxu0 0.0
          %596 = vmatpush1.msra.mxu0 0.0
          %597 = vmatprep.subr.mxu0 0.0
          %598 = vmatpush1.msra.mxu0 0.0
          %599 = vmatprep.subr.mxu0 0.0
          %600 = vmatpush1.msra.mxu0 0.0
          %601 = vmatprep.subr.mxu0 0.0
          %602 = vmatpush1.msra.mxu0 0.0
          %603 = vmatprep.subr.mxu0 0.0
          %604 = vmatpush1.msra.mxu0 0.0
          %605 = vmatprep.subr.mxu0 0.0
          %606 = vmatpush1.msra.mxu0 0.0
          %607 = vmatprep.subr.mxu0 0.0
          %608 = vmatpush1.msra.mxu0 0.0
          %609 = vmatprep.subr.mxu0 0.0
          %610 = vmatpush1.msra.mxu0 0.0
          %611 = vmatprep.subr.mxu0 0.0
          %612 = vmatpush1.msra.mxu0 0.0
          %613 = vmatprep.subr.mxu0 0.0
          %614 = vmatpush1.msra.mxu0 0.0
          %615 = vmatprep.subr.mxu0 0.0
          %616 = vmatpush1.msra.mxu0 0.0
          %617 = vmatprep.subr.mxu0 0.0
          %618 = vmatpush1.msra.mxu0 0.0
          %619 = vmatprep.subr.mxu0 0.0
          %620 = vmatpush1.msra.mxu0 0.0
          %621 = vmatprep.subr.mxu0 0.0
          %622 = vmatpush1.msra.mxu0 0.0
          %623 = vmatprep.subr.mxu0 0.0
          %624 = vmatpush1.msra.mxu0 0.0
          %625 = vmatprep.subr.mxu0 0.0
          %626 = vmatpush1.msra.mxu0 0.0
          %627 = vmatprep.subr.mxu0 0.0
          %628 = vmatpush1.msra.mxu0 0.0
          %629 = vmatprep.subr.mxu0 0.0
          %630 = vmatpush1.msra.mxu0 0.0
          %631 = vmatprep.subr.mxu0 0.0
          %632 = vmatpush1.msra.mxu0 0.0
          %633 = vmatprep.subr.mxu0 0.0
          %634 = vmatpush1.msra.mxu0 0.0
          %635 = vmatprep.subr.mxu0 0.0
          %636 = vmatpush1.msra.mxu0 0.0
          %637 = vmatprep.subr.mxu0 0.0
          %638 = vmatpush1.msra.mxu0 0.0
          %639 = vmatprep.subr.mxu0 0.0
          %640 = vmatpush1.msra.mxu0 0.0
          %641 = vmatprep.mubr.f32.mxu0 0.0
          %642 = vmatmul.mubr.f32.gmra.mrb[0].mxu0 %v477
          %v643 = vpop.f32.mrb[0].mxu0
          %v644 = vadd.f32 0.0, %v643
          %v645 = vpop.f32.mrb[0].mxu0
          %646 = vmatprep.mubr.f32.mxu0 0.0
          %647 = vmatmul.mubr.f32.gmra.mrb[0].mxu0 %v480
          %v648 = vpop.f32.mrb[0].mxu0
          %v649 = vadd.f32 0.0, %v648
          %v650 = vpop.f32.mrb[0].mxu0
          %651 = vmatprep.mubr.f32.mxu0 0.0
          %652 = vmatmul.mubr.f32.gmra.mrb[0].mxu0 %v483
          %v653 = vpop.f32.mrb[0].mxu0
          %v654 = vadd.f32 0.0, %v653
          %v655 = vpop.f32.mrb[0].mxu0
          %656 = vmatprep.mubr.f32.mxu0 0.0
          %657 = vmatmul.mubr.f32.gmra.mrb[0].mxu0 %v486
          %v658 = vpop.f32.mrb[0].mxu0
          %v659 = vadd.f32 0.0, %v658
          %v660 = vpop.f32.mrb[0].mxu0
          %661 = vdwg.mxu0
          %v662 = vmul.f32 %v644, 0.001953125
          %v663 = vmul.f32 %v649, 0.001953125
          %v664 = vmul.f32 %v654, 0.001953125
          %v665 = vmul.f32 %v659, 0.001953125
          %v666 = vmul.f32 %v573, %v573
          %v667 = vmul.f32 %v574, %v574
          %v668 = vmul.f32 %v575, %v575
          %v669 = vmul.f32 %v576, %v576
          %v670 = vsub.f32 %v662, %v666
          %v671 = vsub.f32 %v663, %v667
          %v672 = vsub.f32 %v664, %v668
          %v673 = vsub.f32 %v665, %v669
          %v674 = vld [vmem:[%s2] sm:$0xff]
          %v675 = vld [vmem:[%s2 + $0x8] sm:$0xff]
          %v676 = vld [vmem:[%s2 + $0x10] sm:$0xff]
          %v677 = vld [vmem:[%s2 + $0x18] sm:$0xff]
          %v678 = vadd.f32 %v670, 1e-05
          %v679 = vadd.f32 %v671, 1e-05
          %v680 = vadd.f32 %v672, 1e-05
          %v681 = vadd.f32 %v673, 1e-05
          %v682 = vrsqrt.pop %v678
          %v683 = vrsqrt.pop %v679
          %v684 = vrsqrt.pop %v680
          %v685 = vrsqrt.pop %v681
          %v686 = vmul.f32 %v674, %v682
          %v687 = vmul.f32 %v675, %v683
          %v688 = vmul.f32 %v676, %v684
          %v689 = vmul.f32 %v677, %v685
          %v690 = vld [vmem:[%s3] sm:$0xff]
          %v691 = vld [vmem:[%s3 + $0x8] sm:$0xff]
          %v692 = vld [vmem:[%s3 + $0x10] sm:$0xff]
          %v693 = vld [vmem:[%s3 + $0x18] sm:$0xff]
          %v694 = vmul.f32 %v573, %v686
          %v695 = vmul.f32 %v574, %v687
          %v696 = vmul.f32 %v575, %v688
          %v697 = vmul.f32 %v576, %v689
          %v698 = vsub.f32 %v690, %v694
          %v699 = vsub.f32 %v691, %v695
          %v700 = vsub.f32 %v692, %v696
          %v701 = vsub.f32 %v693, %v697
          %703 = vset.pattern.permute.xlu0 0
          %704 = vperm.xlu0 %703, %v686
          %v705 = vpop.permute.xlu0 %704
          %708 = vset.pattern.permute.xlu0 0
          %709 = vperm.xlu0 %708, %v687
          %v710 = vpop.permute.xlu0 %709
          %713 = vset.pattern.permute.xlu0 0
          %714 = vperm.xlu0 %713, %v688
          %v715 = vpop.permute.xlu0 %714
          %718 = vset.pattern.permute.xlu0 0
          %719 = vperm.xlu0 %718, %v689
          %v720 = vpop.permute.xlu0 %719
          %v722 = vmul.f32 %v431, %v705
          %v723 = vmul.f32 %v432, %v705
          %v724 = vmul.f32 %v433, %v710
          %v725 = vmul.f32 %v434, %v710
          %v726 = vmul.f32 %v435, %v715
          %v727 = vmul.f32 %v436, %v715
          %v728 = vmul.f32 %v437, %v720
          %v729 = vmul.f32 %v438, %v720
          %731 = vset.pattern.permute.xlu0 0
          %732 = vperm.xlu0 %731, %v698
          %v733 = vpop.permute.xlu0 %732
          %736 = vset.pattern.permute.xlu0 0
          %737 = vperm.xlu0 %736, %v699
          %v738 = vpop.permute.xlu0 %737
          %741 = vset.pattern.permute.xlu0 0
          %742 = vperm.xlu0 %741, %v700
          %v743 = vpop.permute.xlu0 %742
          %746 = vset.pattern.permute.xlu0 0
          %747 = vperm.xlu0 %746, %v701
          %v748 = vpop.permute.xlu0 %747
          %v750 = vadd.f32 %v722, %v733
          %v751 = vadd.f32 %v723, %v733
          %v752 = vadd.f32 %v724, %v738
          %v753 = vadd.f32 %v725, %v738
          %v754 = vadd.f32 %v726, %v743
          %v755 = vadd.f32 %v727, %v743
          %v756 = vadd.f32 %v728, %v748
          %v757 = vadd.f32 %v729, %v748
          %v758 = vpack.c.bf16 %v752, %v750
          %v759 = vpack.c.bf16 %v753, %v751
          %v760 = vpack.c.bf16 %v756, %v754
          %v761 = vpack.c.bf16 %v757, %v755
          %v762 = vld [vmem:[%s4] sm:$0xf]
          %v763 = vld [vmem:[%s4 + $0x4] sm:$0xf]
          %v764 = vld [vmem:[%s4 + $0x8] sm:$0xf]
          %v765 = vld [vmem:[%s4 + $0xc] sm:$0xf]
          %v766 = vld [vmem:[%s5] sm:$0xff]
          %v767 = vld [vmem:[%s5 + $0x8] sm:$0xff]
          %v768 = vld [vmem:[%s5 + $0x10] sm:$0xff]
          %v769 = vld [vmem:[%s5 + $0x18] sm:$0xff]
          %771 = vset.pattern.permute.xlu0 0
          %772 = vperm.xlu0 %771, %v766
          %v773 = vpop.permute.xlu0 %772
          %776 = vset.pattern.permute.xlu0 0
          %777 = vperm.xlu0 %776, %v767
          %v778 = vpop.permute.xlu0 %777
          %781 = vset.pattern.permute.xlu0 0
          %782 = vperm.xlu0 %781, %v768
          %v783 = vpop.permute.xlu0 %782
          %786 = vset.pattern.permute.xlu0 0
          %787 = vperm.xlu0 %786, %v769
          %v788 = vpop.permute.xlu0 %787
          %v794 = vunpack.c.l.b16 %v762
          %v795 = vunpack.c.l.b16 %v763
          %v796 = vunpack.c.l.b16 %v764
          %v797 = vunpack.c.l.b16 %v765
          %v798 = vpack.c.b16 %v795, %v794
          %v799 = vpack.c.b16 %v797, %v796
          %v801 = vsel %vm475, %v798, 0
          %v804 = vsel %vm475, %v799, 0
          %806 = vmatprep.subr.bf16.mxu0 %v759
          %807 = vmatpush1.bf16.msra.mxu0 %v758
          %808 = vmatprep.subr.bf16.mxu0 %v761
          %809 = vmatpush1.bf16.msra.mxu0 %v760
          %810 = vmatprep.subr.bf16.mxu0 0
          %811 = vmatpush1.bf16.msra.mxu0 0
          %812 = vmatprep.subr.bf16.mxu0 0
          %813 = vmatpush1.bf16.msra.mxu0 0
          %814 = vmatprep.subr.bf16.mxu0 0
          %815 = vmatpush1.bf16.msra.mxu0 0
          %816 = vmatprep.subr.bf16.mxu0 0
          %817 = vmatpush1.bf16.msra.mxu0 0
          %818 = vmatprep.subr.bf16.mxu0 0
          %819 = vmatpush1.bf16.msra.mxu0 0
          %820 = vmatprep.subr.bf16.mxu0 0
          %821 = vmatpush1.bf16.msra.mxu0 0
          %822 = vmatprep.subr.bf16.mxu0 0
          %823 = vmatpush1.bf16.msra.mxu0 0
          %824 = vmatprep.subr.bf16.mxu0 0
          %825 = vmatpush1.bf16.msra.mxu0 0
          %826 = vmatprep.subr.bf16.mxu0 0
          %827 = vmatpush1.bf16.msra.mxu0 0
          %828 = vmatprep.subr.bf16.mxu0 0
          %829 = vmatpush1.bf16.msra.mxu0 0
          %830 = vmatprep.subr.bf16.mxu0 0
          %831 = vmatpush1.bf16.msra.mxu0 0
          %832 = vmatprep.subr.bf16.mxu0 0
          %833 = vmatpush1.bf16.msra.mxu0 0
          %834 = vmatprep.subr.bf16.mxu0 0
          %835 = vmatpush1.bf16.msra.mxu0 0
          %836 = vmatprep.subr.bf16.mxu0 0
          %837 = vmatpush1.bf16.msra.mxu0 0
          %838 = vmatprep.mubr.bf16.mxu0 0
          %839 = vmatmul.mubr.bf16.gmra.mrb[0].mxu0 %v801
          %v840 = vpop.f32.mrb[0].mxu0
          %v841 = vadd.f32 %v773, %v840
          %v842 = vpop.f32.mrb[0].mxu0
          %v843 = vadd.f32 %v773, %v842
          %v844 = vpop.f32.mrb[0].mxu0
          %v845 = vadd.f32 %v778, %v844
          %v846 = vpop.f32.mrb[0].mxu0
          %v847 = vadd.f32 %v778, %v846
          %848 = vmatprep.mubr.bf16.mxu0 0
          %849 = vmatmul.mubr.bf16.gmra.mrb[0].mxu0 %v804
          %v850 = vpop.f32.mrb[0].mxu0
          %v851 = vadd.f32 %v783, %v850
          %v852 = vpop.f32.mrb[0].mxu0
          %v853 = vadd.f32 %v783, %v852
          %v854 = vpop.f32.mrb[0].mxu0
          %v855 = vadd.f32 %v788, %v854
          %v856 = vpop.f32.mrb[0].mxu0
          %v857 = vadd.f32 %v788, %v856
          %858 = vdwg.mxu0
          %v859 = vpack.c.bf16 %v845, %v841
          %v860 = vpack.c.bf16 %v847, %v843
          %v861 = vpack.c.bf16 %v855, %v851
          %v862 = vpack.c.bf16 %v857, %v853
          %863 = vst [vmem:[#allocation2] sm:$0xff] %v859
          %864 = vst [vmem:[#allocation2 + $0x8] sm:$0xff] %v860
          %865 = vst [vmem:[#allocation2 + $0x10] sm:$0xff] %v861
          %866 = vst [vmem:[#allocation2 + $0x18] sm:$0xff] %v862
          %v867 = vld [vmem:[%s6] sm:$0xf]
          %v868 = vld [vmem:[%s6 + $0x4] sm:$0xf]
          %v869 = vld [vmem:[%s6 + $0x8] sm:$0xf]
          %v870 = vld [vmem:[%s6 + $0xc] sm:$0xf]
          %v871 = vld [vmem:[%s7] sm:$0xff]
          %v872 = vld [vmem:[%s7 + $0x8] sm:$0xff]
          %v873 = vld [vmem:[%s7 + $0x10] sm:$0xff]
          %v874 = vld [vmem:[%s7 + $0x18] sm:$0xff]
          %876 = vset.pattern.permute.xlu0 0
          %877 = vperm.xlu0 %876, %v871
          %v878 = vpop.permute.xlu0 %877
          %881 = vset.pattern.permute.xlu0 0
          %882 = vperm.xlu0 %881, %v872
          %v883 = vpop.permute.xlu0 %882
          %886 = vset.pattern.permute.xlu0 0
          %887 = vperm.xlu0 %886, %v873
          %v888 = vpop.permute.xlu0 %887
          %891 = vset.pattern.permute.xlu0 0
          %892 = vperm.xlu0 %891, %v874
          %v893 = vpop.permute.xlu0 %892
          %v899 = vunpack.c.l.b16 %v867
          %v900 = vunpack.c.l.b16 %v868
          %v901 = vunpack.c.l.b16 %v869
          %v902 = vunpack.c.l.b16 %v870
          %v903 = vpack.c.b16 %v900, %v899
          %v904 = vpack.c.b16 %v902, %v901
          %v906 = vsel %vm475, %v903, 0
          %v909 = vsel %vm475, %v904, 0
          %911 = vmatprep.subr.bf16.mxu0 %v759
          %912 = vmatpush1.bf16.msra.mxu0 %v758
          %913 = vmatprep.subr.bf16.mxu0 %v761
          %914 = vmatpush1.bf16.msra.mxu0 %v760
          %915 = vmatprep.subr.bf16.mxu0 0
          %916 = vmatpush1.bf16.msra.mxu0 0
          %917 = vmatprep.subr.bf16.mxu0 0
          %918 = vmatpush1.bf16.msra.mxu0 0
          %919 = vmatprep.subr.bf16.mxu0 0
          %920 = vmatpush1.bf16.msra.mxu0 0
          %921 = vmatprep.subr.bf16.mxu0 0
          %922 = vmatpush1.bf16.msra.mxu0 0
          %923 = vmatprep.subr.bf16.mxu0 0
          %924 = vmatpush1.bf16.msra.mxu0 0
          %925 = vmatprep.subr.bf16.mxu0 0
          %926 = vmatpush1.bf16.msra.mxu0 0
          %927 = vmatprep.subr.bf16.mxu0 0
          %928 = vmatpush1.bf16.msra.mxu0 0
          %929 = vmatprep.subr.bf16.mxu0 0
          %930 = vmatpush1.bf16.msra.mxu0 0
          %931 = vmatprep.subr.bf16.mxu0 0
          %932 = vmatpush1.bf16.msra.mxu0 0
          %933 = vmatprep.subr.bf16.mxu0 0
          %934 = vmatpush1.bf16.msra.mxu0 0
          %935 = vmatprep.subr.bf16.mxu0 0
          %936 = vmatpush1.bf16.msra.mxu0 0
          %937 = vmatprep.subr.bf16.mxu0 0
          %938 = vmatpush1.bf16.msra.mxu0 0
          %939 = vmatprep.subr.bf16.mxu0 0
          %940 = vmatpush1.bf16.msra.mxu0 0
          %941 = vmatprep.subr.bf16.mxu0 0
          %942 = vmatpush1.bf16.msra.mxu0 0
          %943 = vmatprep.mubr.bf16.mxu0 0
          %944 = vmatmul.mubr.bf16.gmra.mrb[0].mxu0 %v906
          %v945 = vpop.f32.mrb[0].mxu0
          %v946 = vadd.f32 %v878, %v945
          %v947 = vpop.f32.mrb[0].mxu0
          %v948 = vadd.f32 %v878, %v947
          %v949 = vpop.f32.mrb[0].mxu0
          %v950 = vadd.f32 %v883, %v949
          %v951 = vpop.f32.mrb[0].mxu0
          %v952 = vadd.f32 %v883, %v951
          %953 = vmatprep.mubr.bf16.mxu0 0
          %954 = vmatmul.mubr.bf16.gmra.mrb[0].mxu0 %v909
          %v955 = vpop.f32.mrb[0].mxu0
          %v956 = vadd.f32 %v888, %v955
          %v957 = vpop.f32.mrb[0].mxu0
          %v958 = vadd.f32 %v888, %v957
          %v959 = vpop.f32.mrb[0].mxu0
          %v960 = vadd.f32 %v893, %v959
          %v961 = vpop.f32.mrb[0].mxu0
          %v962 = vadd.f32 %v893, %v961
          %963 = vdwg.mxu0
          %v964 = vpack.c.bf16 %v950, %v946
          %v965 = vpack.c.bf16 %v952, %v948
          %v966 = vpack.c.bf16 %v960, %v956
          %v967 = vpack.c.bf16 %v962, %v958
          %968 = vst [vmem:[#allocation3] sm:$0xff] %v964
          %969 = vst [vmem:[#allocation3 + $0x8] sm:$0xff] %v965
          %970 = vst [vmem:[#allocation3 + $0x10] sm:$0xff] %v966
          %971 = vst [vmem:[#allocation3 + $0x18] sm:$0xff] %v967
          %v972 = vld [vmem:[%s8] sm:$0xf]
          %v973 = vld [vmem:[%s8 + $0x4] sm:$0xf]
          %v974 = vld [vmem:[%s8 + $0x8] sm:$0xf]
          %v975 = vld [vmem:[%s8 + $0xc] sm:$0xf]
          %v976 = vld [vmem:[%s9] sm:$0xff]
          %v977 = vld [vmem:[%s9 + $0x8] sm:$0xff]
          %v978 = vld [vmem:[%s9 + $0x10] sm:$0xff]
          %v979 = vld [vmem:[%s9 + $0x18] sm:$0xff]
          %981 = vset.pattern.permute.xlu0 0
          %982 = vperm.xlu0 %981, %v976
          %v983 = vpop.permute.xlu0 %982
          %986 = vset.pattern.permute.xlu0 0
          %987 = vperm.xlu0 %986, %v977
          %v988 = vpop.permute.xlu0 %987
          %991 = vset.pattern.permute.xlu0 0
          %992 = vperm.xlu0 %991, %v978
          %v993 = vpop.permute.xlu0 %992
          %996 = vset.pattern.permute.xlu0 0
          %997 = vperm.xlu0 %996, %v979
          %v998 = vpop.permute.xlu0 %997
          %v1004 = vunpack.c.l.b16 %v972
          %v1005 = vunpack.c.l.b16 %v973
          %v1006 = vunpack.c.l.b16 %v974
          %v1007 = vunpack.c.l.b16 %v975
          %v1008 = vpack.c.b16 %v1005, %v1004
          %v1009 = vpack.c.b16 %v1007, %v1006
          %v1011 = vsel %vm475, %v1008, 0
          %v1014 = vsel %vm475, %v1009, 0
          %1016 = vmatprep.subr.bf16.mxu0 %v759
          %1017 = vmatpush1.bf16.msra.mxu0 %v758
          %1018 = vmatprep.subr.bf16.mxu0 %v761
          %1019 = vmatpush1.bf16.msra.mxu0 %v760
          %1020 = vmatprep.subr.bf16.mxu0 0
          %1021 = vmatpush1.bf16.msra.mxu0 0
          %1022 = vmatprep.subr.bf16.mxu0 0
          %1023 = vmatpush1.bf16.msra.mxu0 0
          %1024 = vmatprep.subr.bf16.mxu0 0
          %1025 = vmatpush1.bf16.msra.mxu0 0
          %1026 = vmatprep.subr.bf16.mxu0 0
          %1027 = vmatpush1.bf16.msra.mxu0 0
          %1028 = vmatprep.subr.bf16.mxu0 0
          %1029 = vmatpush1.bf16.msra.mxu0 0
          %1030 = vmatprep.subr.bf16.mxu0 0
          %1031 = vmatpush1.bf16.msra.mxu0 0
          %1032 = vmatprep.subr.bf16.mxu0 0
          %1033 = vmatpush1.bf16.msra.mxu0 0
          %1034 = vmatprep.subr.bf16.mxu0 0
          %1035 = vmatpush1.bf16.msra.mxu0 0
          %1036 = vmatprep.subr.bf16.mxu0 0
          %1037 = vmatpush1.bf16.msra.mxu0 0
          %1038 = vmatprep.subr.bf16.mxu0 0
          %1039 = vmatpush1.bf16.msra.mxu0 0
          %1040 = vmatprep.subr.bf16.mxu0 0
          %1041 = vmatpush1.bf16.msra.mxu0 0
          %1042 = vmatprep.subr.bf16.mxu0 0
          %1043 = vmatpush1.bf16.msra.mxu0 0
          %1044 = vmatprep.subr.bf16.mxu0 0
          %1045 = vmatpush1.bf16.msra.mxu0 0
          %1046 = vmatprep.subr.bf16.mxu0 0
          %1047 = vmatpush1.bf16.msra.mxu0 0
          %1048 = vmatprep.mubr.bf16.mxu0 0
          %1049 = vmatmul.mubr.bf16.gmra.mrb[0].mxu0 %v1011
          %v1050 = vpop.f32.mrb[0].mxu0
          %v1051 = vadd.f32 %v983, %v1050
          %v1052 = vpop.f32.mrb[0].mxu0
          %v1053 = vadd.f32 %v983, %v1052
          %v1054 = vpop.f32.mrb[0].mxu0
          %v1055 = vadd.f32 %v988, %v1054
          %v1056 = vpop.f32.mrb[0].mxu0
          %v1057 = vadd.f32 %v988, %v1056
          %1058 = vmatprep.mubr.bf16.mxu0 0
          %1059 = vmatmul.mubr.bf16.gmra.mrb[0].mxu0 %v1014
          %v1060 = vpop.f32.mrb[0].mxu0
          %v1061 = vadd.f32 %v993, %v1060
          %v1062 = vpop.f32.mrb[0].mxu0
          %v1063 = vadd.f32 %v993, %v1062
          %v1064 = vpop.f32.mrb[0].mxu0
          %v1065 = vadd.f32 %v998, %v1064
          %v1066 = vpop.f32.mrb[0].mxu0
          %v1067 = vadd.f32 %v998, %v1066
          %1068 = vdwg.mxu0
          %v1069 = vpack.c.bf16 %v1055, %v1051
          %v1070 = vpack.c.bf16 %v1057, %v1053
          %v1071 = vpack.c.bf16 %v1065, %v1061
          %v1072 = vpack.c.bf16 %v1067, %v1063
          %1073 = vst [vmem:[#allocation4] sm:$0xff] %v1069
          %1074 = vst [vmem:[#allocation4 + $0x8] sm:$0xff] %v1070
          %1075 = vst [vmem:[#allocation4 + $0x10] sm:$0xff] %v1071
          %1076 = vst [vmem:[#allocation4 + $0x18] sm:$0xff] %v1072
        $region72: #{tpu_custom_call.1} parent=67 // pred_fallthru
          _
        %s1077 = smul.u32 %s31, 128
        %s1078 = sshra.s32 %s1077, 7
        %s1079 = sand.u32 %s1077, 127
        %s1080 = smul.addr %s1078, 8
        %s1081 = scalar_lea.vmem [#allocation2], %s1080
        %v1082 = vld [vmem:[%s1081] sm:$0xff]
        %v1083 = vld [vmem:[%s1081 + $0x10] sm:$0xff]
        %v1084 = vld [vmem:[#allocation3] sm:$0xff]
        %v1085 = vld [vmem:[#allocation3 + $0x8] sm:$0xff]
        %v1086 = vld [vmem:[#allocation3 + $0x10] sm:$0xff]
        %v1087 = vld [vmem:[#allocation3 + $0x18] sm:$0xff]
        %1088 = vxpose.xlu0.c.b16.start [1/8] %v1082, 128
        %1089 = vxpose.xlu0.c.b16.cont [2/8] %v1083, 128
        %1090 = vxpose.xlu0.c.b16.cont [3/8] 0, 128
        %1091 = vxpose.xlu0.c.b16.cont [4/8] 0, 128
        %1092 = vxpose.xlu0.c.b16.cont [5/8] 0, 128
        %1093 = vxpose.xlu0.c.b16.cont [6/8] 0, 128
        %1094 = vxpose.xlu0.c.b16.cont [7/8] 0, 128
        %1095 = vxpose.xlu0.c.b16.end [8/8] 0, 128
        %v1096 = vpop.trf.xlu0
        %v1097 = vpop.trf.xlu0
        %v1098 = vpop.trf.xlu0
        %v1099 = vpop.trf.xlu0
        %v1100 = vpop.trf.xlu0
        %v1101 = vpop.trf.xlu0
        %v1102 = vpop.trf.xlu0
        %v1103 = vpop.trf.xlu0
        %vm1104 = vcmask 261120
        %v1106 = vsel %vm1104, %v1096, 0
        %v1109 = vsel %vm1104, %v1097, 0
        %v1112 = vsel %vm1104, %v1098, 0
        %v1115 = vsel %vm1104, %v1099, 0
        %v1118 = vsel %vm1104, %v1100, 0
        %v1121 = vsel %vm1104, %v1101, 0
        %v1124 = vsel %vm1104, %v1102, 0
        %v1127 = vsel %vm1104, %v1103, 0
        %1129 = vmatprep.subr.bf16.mxu0 %v1085
        %1130 = vmatpush1.bf16.msra.mxu0 %v1084
        %1131 = vmatprep.subr.bf16.mxu0 %v1087
        %1132 = vmatpush1.bf16.msra.mxu0 %v1086
        %1133 = vmatprep.subr.bf16.mxu0 0
        %1134 = vmatpush1.bf16.msra.mxu0 0
        %1135 = vmatprep.subr.bf16.mxu0 0
        %1136 = vmatpush1.bf16.msra.mxu0 0
        %1137 = vmatprep.subr.bf16.mxu0 0
        %1138 = vmatpush1.bf16.msra.mxu0 0
        %1139 = vmatprep.subr.bf16.mxu0 0
        %1140 = vmatpush1.bf16.msra.mxu0 0
        %1141 = vmatprep.subr.bf16.mxu0 0
        %1142 = vmatpush1.bf16.msra.mxu0 0
        %1143 = vmatprep.subr.bf16.mxu0 0
        %1144 = vmatpush1.bf16.msra.mxu0 0
        %1145 = vmatprep.subr.bf16.mxu0 0
        %1146 = vmatpush1.bf16.msra.mxu0 0
        %1147 = vmatprep.subr.bf16.mxu0 0
        %1148 = vmatpush1.bf16.msra.mxu0 0
        %1149 = vmatprep.subr.bf16.mxu0 0
        %1150 = vmatpush1.bf16.msra.mxu0 0
        %1151 = vmatprep.subr.bf16.mxu0 0
        %1152 = vmatpush1.bf16.msra.mxu0 0
        %1153 = vmatprep.subr.bf16.mxu0 0
        %1154 = vmatpush1.bf16.msra.mxu0 0
        %1155 = vmatprep.subr.bf16.mxu0 0
        %1156 = vmatpush1.bf16.msra.mxu0 0
        %1157 = vmatprep.subr.bf16.mxu0 0
        %1158 = vmatpush1.bf16.msra.mxu0 0
        %1159 = vmatprep.subr.bf16.mxu0 0
        %1160 = vmatpush1.bf16.msra.mxu0 0
        %1161 = vmatprep.mubr.bf16.mxu0 0
        %1162 = vmatmul.mubr.bf16.gmra.mrb[0].mxu0 %v1106
        %v1163 = vpop.f32.mrb[0].mxu0
        %v1164 = vadd.f32 0.0, %v1163
        %v1165 = vpop.f32.mrb[0].mxu0
        %v1166 = vadd.f32 0.0, %v1165
        %v1167 = vpop.f32.mrb[0].mxu0
        %v1168 = vadd.f32 0.0, %v1167
        %v1169 = vpop.f32.mrb[0].mxu0
        %v1170 = vadd.f32 0.0, %v1169
        %1171 = vmatprep.mubr.bf16.mxu0 0
        %1172 = vmatmul.mubr.bf16.gmra.mrb[0].mxu0 %v1109
        %v1173 = vpop.f32.mrb[0].mxu0
        %v1174 = vadd.f32 0.0, %v1173
        %v1175 = vpop.f32.mrb[0].mxu0
        %v1176 = vadd.f32 0.0, %v1175
        %v1177 = vpop.f32.mrb[0].mxu0
        %v1178 = vadd.f32 0.0, %v1177
        %v1179 = vpop.f32.mrb[0].mxu0
        %v1180 = vadd.f32 0.0, %v1179
        %1181 = vmatprep.mubr.bf16.mxu0 0
        %1182 = vmatmul.mubr.bf16.gmra.mrb[0].mxu0 %v1112
        %v1183 = vpop.f32.mrb[0].mxu0
        %v1184 = vadd.f32 0.0, %v1183
        %v1185 = vpop.f32.mrb[0].mxu0
        %v1186 = vadd.f32 0.0, %v1185
        %v1187 = vpop.f32.mrb[0].mxu0
        %v1188 = vadd.f32 0.0, %v1187
        %v1189 = vpop.f32.mrb[0].mxu0
        %v1190 = vadd.f32 0.0, %v1189
        %1191 = vmatprep.mubr.bf16.mxu0 0
        %1192 = vmatmul.mubr.bf16.gmra.mrb[0].mxu0 %v1115
        %v1193 = vpop.f32.mrb[0].mxu0
        %v1194 = vadd.f32 0.0, %v1193
        %v1195 = vpop.f32.mrb[0].mxu0
        %v1196 = vadd.f32 0.0, %v1195
        %v1197 = vpop.f32.mrb[0].mxu0
        %v1198 = vadd.f32 0.0, %v1197
        %v1199 = vpop.f32.mrb[0].mxu0
        %v1200 = vadd.f32 0.0, %v1199
        %1201 = vmatprep.mubr.bf16.mxu0 0
        %1202 = vmatmul.mubr.bf16.gmra.mrb[0].mxu0 %v1118
        %v1203 = vpop.f32.mrb[0].mxu0
        %v1204 = vadd.f32 0.0, %v1203
        %v1205 = vpop.f32.mrb[0].mxu0
        %v1206 = vadd.f32 0.0, %v1205
        %v1207 = vpop.f32.mrb[0].mxu0
        %v1208 = vadd.f32 0.0, %v1207
        %v1209 = vpop.f32.mrb[0].mxu0
        %v1210 = vadd.f32 0.0, %v1209
        %1211 = vmatprep.mubr.bf16.mxu0 0
        %1212 = vmatmul.mubr.bf16.gmra.mrb[0].mxu0 %v1121
        %v1213 = vpop.f32.mrb[0].mxu0
        %v1214 = vadd.f32 0.0, %v1213
        %v1215 = vpop.f32.mrb[0].mxu0
        %v1216 = vadd.f32 0.0, %v1215
        %v1217 = vpop.f32.mrb[0].mxu0
        %v1218 = vadd.f32 0.0, %v1217
        %v1219 = vpop.f32.mrb[0].mxu0
        %v1220 = vadd.f32 0.0, %v1219
        %1221 = vmatprep.mubr.bf16.mxu0 0
        %1222 = vmatmul.mubr.bf16.gmra.mrb[0].mxu0 %v1124
        %v1223 = vpop.f32.mrb[0].mxu0
        %v1224 = vadd.f32 0.0, %v1223
        %v1225 = vpop.f32.mrb[0].mxu0
        %v1226 = vadd.f32 0.0, %v1225
        %v1227 = vpop.f32.mrb[0].mxu0
        %v1228 = vadd.f32 0.0, %v1227
        %v1229 = vpop.f32.mrb[0].mxu0
        %v1230 = vadd.f32 0.0, %v1229
        %1231 = vmatprep.mubr.bf16.mxu0 0
        %1232 = vmatmul.mubr.bf16.gmra.mrb[0].mxu0 %v1127
        %v1233 = vpop.f32.mrb[0].mxu0
        %v1234 = vadd.f32 0.0, %v1233
        %v1235 = vpop.f32.mrb[0].mxu0
        %v1236 = vadd.f32 0.0, %v1235
        %v1237 = vpop.f32.mrb[0].mxu0
        %v1238 = vadd.f32 0.0, %v1237
        %v1239 = vpop.f32.mrb[0].mxu0
        %v1240 = vadd.f32 0.0, %v1239
        %1241 = vdwg.mxu0
        %v1242 = vmax.f32 %v1164, %v1166
        %1243 = vmax.xlane.f32.xlu0 %v1242
        %v1244 = vpop.xlane.xlu0 %1243
        %v1245 = vmax.f32 %v1168, %v1170
        %1246 = vmax.xlane.f32.xlu0 %v1245
        %v1247 = vpop.xlane.xlu0 %1246
        %v1248 = vmax.f32 %v1174, %v1176
        %1249 = vmax.xlane.f32.xlu0 %v1248
        %v1250 = vpop.xlane.xlu0 %1249
        %v1251 = vmax.f32 %v1178, %v1180
        %1252 = vmax.xlane.f32.xlu0 %v1251
        %v1253 = vpop.xlane.xlu0 %1252
        %v1254 = vmax.f32 %v1184, %v1186
        %1255 = vmax.xlane.f32.xlu0 %v1254
        %v1256 = vpop.xlane.xlu0 %1255
        %v1257 = vmax.f32 %v1188, %v1190
        %1258 = vmax.xlane.f32.xlu0 %v1257
        %v1259 = vpop.xlane.xlu0 %1258
        %v1260 = vmax.f32 %v1194, %v1196
        %1261 = vmax.xlane.f32.xlu0 %v1260
        %v1262 = vpop.xlane.xlu0 %1261
        %v1263 = vmax.f32 %v1198, %v1200
        %1264 = vmax.xlane.f32.xlu0 %v1263
        %v1265 = vpop.xlane.xlu0 %1264
        %v1266 = vmax.f32 %v1204, %v1206
        %1267 = vmax.xlane.f32.xlu0 %v1266
        %v1268 = vpop.xlane.xlu0 %1267
        %v1269 = vmax.f32 %v1208, %v1210
        %1270 = vmax.xlane.f32.xlu0 %v1269
        %v1271 = vpop.xlane.xlu0 %1270
        %v1272 = vmax.f32 %v1214, %v1216
        %1273 = vmax.xlane.f32.xlu0 %v1272
        %v1274 = vpop.xlane.xlu0 %1273
        %v1275 = vmax.f32 %v1218, %v1220
        %1276 = vmax.xlane.f32.xlu0 %v1275
        %v1277 = vpop.xlane.xlu0 %1276
        %v1278 = vmax.f32 %v1224, %v1226
        %1279 = vmax.xlane.f32.xlu0 %v1278
        %v1280 = vpop.xlane.xlu0 %1279
        %v1281 = vmax.f32 %v1228, %v1230
        %1282 = vmax.xlane.f32.xlu0 %v1281
        %v1283 = vpop.xlane.xlu0 %1282
        %v1284 = vmax.f32 %v1234, %v1236
        %1285 = vmax.xlane.f32.xlu0 %v1284
        %v1286 = vpop.xlane.xlu0 %1285
        %v1287 = vmax.f32 %v1238, %v1240
        %1288 = vmax.xlane.f32.xlu0 %v1287
        %v1289 = vpop.xlane.xlu0 %1288
        %v1290 = vsub.f32 %v1164, %v1244
        %v1291 = vsub.f32 %v1166, %v1244
        %v1292 = vsub.f32 %v1168, %v1247
        %v1293 = vsub.f32 %v1170, %v1247
        %v1294 = vsub.f32 %v1174, %v1250
        %v1295 = vsub.f32 %v1176, %v1250
        %v1296 = vsub.f32 %v1178, %v1253
        %v1297 = vsub.f32 %v1180, %v1253
        %v1298 = vsub.f32 %v1184, %v1256
        %v1299 = vsub.f32 %v1186, %v1256
        %v1300 = vsub.f32 %v1188, %v1259
        %v1301 = vsub.f32 %v1190, %v1259
        %v1302 = vsub.f32 %v1194, %v1262
        %v1303 = vsub.f32 %v1196, %v1262
        %v1304 = vsub.f32 %v1198, %v1265
        %v1305 = vsub.f32 %v1200, %v1265
        %v1306 = vsub.f32 %v1204, %v1268
        %v1307 = vsub.f32 %v1206, %v1268
        %v1308 = vsub.f32 %v1208, %v1271
        %v1309 = vsub.f32 %v1210, %v1271
        %v1310 = vsub.f32 %v1214, %v1274
        %v1311 = vsub.f32 %v1216, %v1274
        %v1312 = vsub.f32 %v1218, %v1277
        %v1313 = vsub.f32 %v1220, %v1277
        %v1314 = vsub.f32 %v1224, %v1280
        %v1315 = vsub.f32 %v1226, %v1280
        %v1316 = vsub.f32 %v1228, %v1283
        %v1317 = vsub.f32 %v1230, %v1283
        %v1318 = vsub.f32 %v1234, %v1286
        %v1319 = vsub.f32 %v1236, %v1286
        %v1320 = vsub.f32 %v1238, %v1289
        %v1321 = vsub.f32 %v1240, %v1289
        %v1322 = vmul.f32 %v1290, 1.442695
        %v1323 = vpow.pop %v1322
        %v1324 = vmul.f32 %v1291, 1.442695
        %v1325 = vpow.pop %v1324
        %v1326 = vmul.f32 %v1292, 1.442695
        %v1327 = vpow.pop %v1326
        %v1328 = vmul.f32 %v1293, 1.442695
        %v1329 = vpow.pop %v1328
        %v1330 = vmul.f32 %v1294, 1.442695
        %v1331 = vpow.pop %v1330
        %v1332 = vmul.f32 %v1295, 1.442695
        %v1333 = vpow.pop %v1332
        %v1334 = vmul.f32 %v1296, 1.442695
        %v1335 = vpow.pop %v1334
        %v1336 = vmul.f32 %v1297, 1.442695
        %v1337 = vpow.pop %v1336
        %v1338 = vmul.f32 %v1298, 1.442695
        %v1339 = vpow.pop %v1338
        %v1340 = vmul.f32 %v1299, 1.442695
        %v1341 = vpow.pop %v1340
        %v1342 = vmul.f32 %v1300, 1.442695
        %v1343 = vpow.pop %v1342
        %v1344 = vmul.f32 %v1301, 1.442695
        %v1345 = vpow.pop %v1344
        %v1346 = vmul.f32 %v1302, 1.442695
        %v1347 = vpow.pop %v1346
        %v1348 = vmul.f32 %v1303, 1.442695
        %v1349 = vpow.pop %v1348
        %v1350 = vmul.f32 %v1304, 1.442695
        %v1351 = vpow.pop %v1350
        %v1352 = vmul.f32 %v1305, 1.442695
        %v1353 = vpow.pop %v1352
        %v1354 = vmul.f32 %v1306, 1.442695
        %v1355 = vpow.pop %v1354
        %v1356 = vmul.f32 %v1307, 1.442695
        %v1357 = vpow.pop %v1356
        %v1358 = vmul.f32 %v1308, 1.442695
        %v1359 = vpow.pop %v1358
        %v1360 = vmul.f32 %v1309, 1.442695
        %v1361 = vpow.pop %v1360
        %v1362 = vmul.f32 %v1310, 1.442695
        %v1363 = vpow.pop %v1362
        %v1364 = vmul.f32 %v1311, 1.442695
        %v1365 = vpow.pop %v1364
        %v1366 = vmul.f32 %v1312, 1.442695
        %v1367 = vpow.pop %v1366
        %v1368 = vmul.f32 %v1313, 1.442695
        %v1369 = vpow.pop %v1368
        %v1370 = vmul.f32 %v1314, 1.442695
        %v1371 = vpow.pop %v1370
        %v1372 = vmul.f32 %v1315, 1.442695
        %v1373 = vpow.pop %v1372
        %v1374 = vmul.f32 %v1316, 1.442695
        %v1375 = vpow.pop %v1374
        %v1376 = vmul.f32 %v1317, 1.442695
        %v1377 = vpow.pop %v1376
        %v1378 = vmul.f32 %v1318, 1.442695
        %v1379 = vpow.pop %v1378
        %v1380 = vmul.f32 %v1319, 1.442695
        %v1381 = vpow.pop %v1380
        %v1382 = vmul.f32 %v1320, 1.442695
        %v1383 = vpow.pop %v1382
        %v1384 = vmul.f32 %v1321, 1.442695
        %v1385 = vpow.pop %v1384
        %v1386 = vpack.c.bf16 %v1327, %v1323
        %v1387 = vpack.c.bf16 %v1329, %v1325
        %v1388 = vpack.c.bf16 %v1335, %v1331
        %v1389 = vpack.c.bf16 %v1337, %v1333
        %v1390 = vpack.c.bf16 %v1343, %v1339
        %v1391 = vpack.c.bf16 %v1345, %v1341
        %v1392 = vpack.c.bf16 %v1351, %v1347
        %v1393 = vpack.c.bf16 %v1353, %v1349
        %v1394 = vpack.c.bf16 %v1359, %v1355
        %v1395 = vpack.c.bf16 %v1361, %v1357
        %v1396 = vpack.c.bf16 %v1367, %v1363
        %v1397 = vpack.c.bf16 %v1369, %v1365
        %v1398 = vpack.c.bf16 %v1375, %v1371
        %v1399 = vpack.c.bf16 %v1377, %v1373
        %v1400 = vpack.c.bf16 %v1383, %v1379
        %v1401 = vpack.c.bf16 %v1385, %v1381
        %1402 = vmatprep.subr.mxu0 %v1325
        %1403 = vmatpush1.xpose.msra.mxu0 %v1323
        %1404 = vmatprep.subr.mxu0 %v1329
        %1405 = vmatpush1.xpose.msra.mxu0 %v1327
        %1406 = vmatprep.subr.mxu0 %v1333
        %1407 = vmatpush1.xpose.msra.mxu0 %v1331
        %1408 = vmatprep.subr.mxu0 %v1337
        %1409 = vmatpush1.xpose.msra.mxu0 %v1335
        %1410 = vmatprep.subr.mxu0 %v1341
        %1411 = vmatpush1.xpose.msra.mxu0 %v1339
        %1412 = vmatprep.subr.mxu0 %v1345
        %1413 = vmatpush1.xpose.msra.mxu0 %v1343
        %1414 = vmatprep.subr.mxu0 %v1349
        %1415 = vmatpush1.xpose.msra.mxu0 %v1347
        %1416 = vmatprep.subr.mxu0 %v1353
        %1417 = vmatpush1.xpose.msra.mxu0 %v1351
        %1418 = vmatprep.subr.mxu0 %v1357
        %1419 = vmatpush1.xpose.msra.mxu0 %v1355
        %1420 = vmatprep.subr.mxu0 %v1361
        %1421 = vmatpush1.xpose.msra.mxu0 %v1359
        %1422 = vmatprep.subr.mxu0 %v1365
        %1423 = vmatpush1.xpose.msra.mxu0 %v1363
        %1424 = vmatprep.subr.mxu0 %v1369
        %1425 = vmatpush1.xpose.msra.mxu0 %v1367
        %1426 = vmatprep.subr.mxu0 %v1373
        %1427 = vmatpush1.xpose.msra.mxu0 %v1371
        %1428 = vmatprep.subr.mxu0 %v1377
        %1429 = vmatpush1.xpose.msra.mxu0 %v1375
        %1430 = vmatprep.subr.mxu0 %v1381
        %1431 = vmatpush1.xpose.msra.mxu0 %v1379
        %1432 = vmatprep.subr.mxu0 %v1385
        %1433 = vmatpush1.xpose.msra.mxu0 %v1383
        %1434 = vmatprep.subr.mxu0 0.0
        %1435 = vmatpush1.xpose.msra.mxu0 0.0
        %1436 = vmatprep.subr.mxu0 0.0
        %1437 = vmatpush1.xpose.msra.mxu0 0.0
        %1438 = vmatprep.subr.mxu0 0.0
        %1439 = vmatpush1.xpose.msra.mxu0 0.0
        %1440 = vmatprep.subr.mxu0 0.0
        %1441 = vmatpush1.xpose.msra.mxu0 0.0
        %1442 = vmatprep.subr.mxu0 0.0
        %1443 = vmatpush1.xpose.msra.mxu0 0.0
        %1444 = vmatprep.subr.mxu0 0.0
        %1445 = vmatpush1.xpose.msra.mxu0 0.0
        %1446 = vmatprep.subr.mxu0 0.0
        %1447 = vmatpush1.xpose.msra.mxu0 0.0
        %1448 = vmatprep.subr.mxu0 0.0
        %1449 = vmatpush1.xpose.msra.mxu0 0.0
        %1450 = vmatprep.subr.mxu0 0.0
        %1451 = vmatpush1.xpose.msra.mxu0 0.0
        %1452 = vmatprep.subr.mxu0 0.0
        %1453 = vmatpush1.xpose.msra.mxu0 0.0
        %1454 = vmatprep.subr.mxu0 0.0
        %1455 = vmatpush1.xpose.msra.mxu0 0.0
        %1456 = vmatprep.subr.mxu0 0.0
        %1457 = vmatpush1.xpose.msra.mxu0 0.0
        %1458 = vmatprep.subr.mxu0 0.0
        %1459 = vmatpush1.xpose.msra.mxu0 0.0
        %1460 = vmatprep.subr.mxu0 0.0
        %1461 = vmatpush1.xpose.msra.mxu0 0.0
        %1462 = vmatprep.subr.mxu0 0.0
        %1463 = vmatpush1.xpose.msra.mxu0 0.0
        %1464 = vmatprep.subr.mxu0 0.0
        %1465 = vmatpush1.xpose.msra.mxu0 0.0
        %1466 = vmatprep.mubr.f32.mxu0 1.0
        %1467 = vmatmul.mubr.f32.gmra.mrb[0].mxu0 1.0
        %v1468 = vpop.f32.mrb[0].mxu0
        %v1469 = vadd.f32 0.0, %v1468
        %v1470 = vpop.f32.mrb[0].mxu0
        %1471 = vdwg.mxu0
        %v1472 = vrcp.pop %v1469
        %v1473 = vld [vmem:[#allocation4] sm:$0xff]
        %v1474 = vld [vmem:[#allocation4 + $0x8] sm:$0xff]
        %v1475 = vld [vmem:[#allocation4 + $0x10] sm:$0xff]
        %v1476 = vld [vmem:[#allocation4 + $0x18] sm:$0xff]
        %1477 = vmatprep.subr.bf16.mxu0 %v1387
        %1478 = vmatpush1.bf16.xpose.msra.mxu0 %v1386
        %1479 = vmatprep.subr.bf16.mxu0 %v1389
        %1480 = vmatpush1.bf16.xpose.msra.mxu0 %v1388
        %1481 = vmatprep.subr.bf16.mxu0 %v1391
        %1482 = vmatpush1.bf16.xpose.msra.mxu0 %v1390
        %1483 = vmatprep.subr.bf16.mxu0 %v1393
        %1484 = vmatpush1.bf16.xpose.msra.mxu0 %v1392
        %1485 = vmatprep.subr.bf16.mxu0 %v1395
        %1486 = vmatpush1.bf16.xpose.msra.mxu0 %v1394
        %1487 = vmatprep.subr.bf16.mxu0 %v1397
        %1488 = vmatpush1.bf16.xpose.msra.mxu0 %v1396
        %1489 = vmatprep.subr.bf16.mxu0 %v1399
        %1490 = vmatpush1.bf16.xpose.msra.mxu0 %v1398
        %1491 = vmatprep.subr.bf16.mxu0 %v1401
        %1492 = vmatpush1.bf16.xpose.msra.mxu0 %v1400
        %1493 = vmatprep.subr.bf16.mxu0 0
        %1494 = vmatpush1.bf16.xpose.msra.mxu0 0
        %1495 = vmatprep.subr.bf16.mxu0 0
        %1496 = vmatpush1.bf16.xpose.msra.mxu0 0
        %1497 = vmatprep.subr.bf16.mxu0 0
        %1498 = vmatpush1.bf16.xpose.msra.mxu0 0
        %1499 = vmatprep.subr.bf16.mxu0 0
        %1500 = vmatpush1.bf16.xpose.msra.mxu0 0
        %1501 = vmatprep.subr.bf16.mxu0 0
        %1502 = vmatpush1.bf16.xpose.msra.mxu0 0
        %1503 = vmatprep.subr.bf16.mxu0 0
        %1504 = vmatpush1.bf16.xpose.msra.mxu0 0
        %1505 = vmatprep.subr.bf16.mxu0 0
        %1506 = vmatpush1.bf16.xpose.msra.mxu0 0
        %1507 = vmatprep.subr.bf16.mxu0 0
        %1508 = vmatpush1.bf16.xpose.msra.mxu0 0
        %1509 = vmatprep.mubr.bf16.mxu0 %v1474
        %1510 = vmatmul.mubr.bf16.gmra.mrb[0].mxu0 %v1473
        %v1511 = vpop.f32.mrb[0].mxu0
        %v1512 = vadd.f32 0.0, %v1511
        %v1513 = vpop.f32.mrb[0].mxu0
        %v1514 = vpop.f32.mrb[0].mxu0
        %v1515 = vadd.f32 0.0, %v1514
        %v1516 = vpop.f32.mrb[0].mxu0
        %1517 = vmatprep.mubr.bf16.mxu0 %v1476
        %1518 = vmatmul.mubr.bf16.gmra.mrb[0].mxu0 %v1475
        %v1519 = vpop.f32.mrb[0].mxu0
        %v1520 = vadd.f32 0.0, %v1519
        %v1521 = vpop.f32.mrb[0].mxu0
        %v1522 = vpop.f32.mrb[0].mxu0
        %v1523 = vadd.f32 0.0, %v1522
        %v1524 = vpop.f32.mrb[0].mxu0
        %1525 = vdwg.mxu0
        %v1526 = vlaneseq
        %v1527 = vshrl.u32 %v1526, 7
        %v1528 = vsub.s32 0, %v1527
        %v1529 = vrot.slane %v1472, %v1528
        %v1530 = vmul.f32 %v1512, %v1529
        %v1531 = vmul.f32 %v1515, %v1529
        %v1532 = vmul.f32 %v1520, %v1529
        %v1533 = vmul.f32 %v1523, %v1529
        %v1534 = vpack.c.bf16 %v1531, %v1530
        %v1535 = vpack.c.bf16 %v1533, %v1532
        %v1536 = vld [vmem:[%s10] sm:$0xf]
        %v1537 = vld [vmem:[%s10 + $0x4] sm:$0xf]
        %v1538 = vld [vmem:[%s10 + $0x8] sm:$0xf]
        %v1539 = vld [vmem:[%s10 + $0xc] sm:$0xf]
        %v1540 = vld [vmem:[%s11] sm:$0xff]
        %v1541 = vld [vmem:[%s11 + $0x8] sm:$0xff]
        %v1542 = vld [vmem:[%s11 + $0x10] sm:$0xff]
        %v1543 = vld [vmem:[%s11 + $0x18] sm:$0xff]
        %1545 = vset.pattern.permute.xlu0 0
        %1546 = vperm.xlu0 %1545, %v1540
        %v1547 = vpop.permute.xlu0 %1546
        %1550 = vset.pattern.permute.xlu0 0
        %1551 = vperm.xlu0 %1550, %v1541
        %v1552 = vpop.permute.xlu0 %1551
        %1555 = vset.pattern.permute.xlu0 0
        %1556 = vperm.xlu0 %1555, %v1542
        %v1557 = vpop.permute.xlu0 %1556
        %1560 = vset.pattern.permute.xlu0 0
        %1561 = vperm.xlu0 %1560, %v1543
        %v1562 = vpop.permute.xlu0 %1561
        %v1568 = vunpack.c.l.b16 %v1536
        %v1569 = vunpack.c.l.b16 %v1537
        %v1570 = vunpack.c.l.b16 %v1538
        %v1571 = vunpack.c.l.b16 %v1539
        %v1572 = vpack.c.b16 %v1569, %v1568
        %v1573 = vpack.c.b16 %v1571, %v1570
        %v1575 = vsel %vm1104, %v1572, 0
        %v1578 = vsel %vm1104, %v1573, 0
        %1580 = vmatprep.subr.bf16.mxu0 0
        %1581 = vmatpush1.bf16.msra.mxu0 %v1534
        %1582 = vmatprep.subr.bf16.mxu0 0
        %1583 = vmatpush1.bf16.msra.mxu0 %v1535
        %1584 = vmatprep.subr.bf16.mxu0 0
        %1585 = vmatpush1.bf16.msra.mxu0 0
        %1586 = vmatprep.subr.bf16.mxu0 0
        %1587 = vmatpush1.bf16.msra.mxu0 0
        %1588 = vmatprep.subr.bf16.mxu0 0
        %1589 = vmatpush1.bf16.msra.mxu0 0
        %1590 = vmatprep.subr.bf16.mxu0 0
        %1591 = vmatpush1.bf16.msra.mxu0 0
        %1592 = vmatprep.subr.bf16.mxu0 0
        %1593 = vmatpush1.bf16.msra.mxu0 0
        %1594 = vmatprep.subr.bf16.mxu0 0
        %1595 = vmatpush1.bf16.msra.mxu0 0
        %1596 = vmatprep.subr.bf16.mxu0 0
        %1597 = vmatpush1.bf16.msra.mxu0 0
        %1598 = vmatprep.subr.bf16.mxu0 0
        %1599 = vmatpush1.bf16.msra.mxu0 0
        %1600 = vmatprep.subr.bf16.mxu0 0
        %1601 = vmatpush1.bf16.msra.mxu0 0
        %1602 = vmatprep.subr.bf16.mxu0 0
        %1603 = vmatpush1.bf16.msra.mxu0 0
        %1604 = vmatprep.subr.bf16.mxu0 0
        %1605 = vmatpush1.bf16.msra.mxu0 0
        %1606 = vmatprep.subr.bf16.mxu0 0
        %1607 = vmatpush1.bf16.msra.mxu0 0
        %1608 = vmatprep.subr.bf16.mxu0 0
        %1609 = vmatpush1.bf16.msra.mxu0 0
        %1610 = vmatprep.subr.bf16.mxu0 0
        %1611 = vmatpush1.bf16.msra.mxu0 0
        %1612 = vmatprep.mubr.bf16.mxu0 0
        %1613 = vmatmul.mubr.bf16.gmra.mrb[0].mxu0 %v1575
        %v1614 = vpop.f32.mrb[0].mxu0
        %v1615 = vadd.f32 %v1547, %v1614
        %v1616 = vpop.f32.mrb[0].mxu0
        %v1617 = vpop.f32.mrb[0].mxu0
        %v1618 = vadd.f32 %v1552, %v1617
        %v1619 = vpop.f32.mrb[0].mxu0
        %1620 = vmatprep.mubr.bf16.mxu0 0
        %1621 = vmatmul.mubr.bf16.gmra.mrb[0].mxu0 %v1578
        %v1622 = vpop.f32.mrb[0].mxu0
        %v1623 = vadd.f32 %v1557, %v1622
        %v1624 = vpop.f32.mrb[0].mxu0
        %v1625 = vpop.f32.mrb[0].mxu0
        %v1626 = vadd.f32 %v1562, %v1625
        %v1627 = vpop.f32.mrb[0].mxu0
        %1628 = vdwg.mxu0
        %s1629 = smul.addr %s1078, 8
        %s1630 = scalar_lea.vmem %s425, %s1629
        %v1631 = vld [vmem:[%s1630] sm:$0xff]
        %v1632 = vld [vmem:[%s1630 + $0x10] sm:$0xff]
        %v1633 = vld [vmem:[%s1630 + $0x20] sm:$0xff]
        %v1634 = vld [vmem:[%s1630 + $0x30] sm:$0xff]
        %v1635 = vadd.f32 %v1631, %v1615
        %v1636 = vadd.f32 %v1632, %v1618
        %v1637 = vadd.f32 %v1633, %v1623
        %v1638 = vadd.f32 %v1634, %v1626
        %1639 = vst [vmem:[%s420] sm:$0xff] %v1635
        %1640 = vst [vmem:[%s420 + $0x8] sm:$0xff] %v1636
        %1641 = vst [vmem:[%s420 + $0x10] sm:$0xff] %v1637
        %1642 = vst [vmem:[%s420 + $0x18] sm:$0xff] %v1638
        %s1643 = sand.u32 %s305, 1
        %s1644 = scalar_lea.sflag [#allocation6], %s1643
        %s1645 = sand.u32 %s305, 1
        %s1646 = smul.addr %s1645, 32
        %s1647 = scalar_lea.vmem [#allocation5], %s1646
        // Predicated region
        $region73: #{tpu_custom_call.1} parent=67 // pred_check
          %p1648 = pneg %p315
        $region74: #{tpu_custom_call.1} parent=67 // pred_check_branch
          %1650 = sbr.rel (%p1648) target = $region76
        $region75: #{tpu_custom_call.1} parent=67 // pred_region
          %s1652 = ssub.s32 512, 512
          %1653 = vsyncadd %s1644, %s1652
          %s1654 = smul.addr %s30, 8
          %s1655 = sadd.s32 %s31, %s1654
          %s1656 = smul.addr %s1655, 128
          %s1657 = scalar_lea.hbm %s12, %s1656
          %s1658 = sshll.u32 %s1647, 4
          %s1659 = int_to_ptr.vmem [resolvable:$true] %s1658
          %1664 = dma.vmem_to_hbm [thread:$0]  %s1659, 512, %s1657, %s1644, 128, 256, 8
        $region76: #{tpu_custom_call.1} parent=67 // pred_fallthru
          _
      $region68: #{tpu_custom_call.1} parent=5 // pred_fallthru
        _
      %p1665 = scmp.le.s32.totalorder 2, %s21
      // Predicated region
      $region77: #{tpu_custom_call.1} parent=5 // pred_check
        %p1666 = pneg %p1665
      $region78: #{tpu_custom_call.1} parent=5 // pred_check_branch
        %1668 = sbr.rel (%p1666) target = $region80
      $region79: #{tpu_custom_call.1} parent=5 // pred_region
        %s1669 = ssub.s32 %s21, 2
        // Predicated region
        $region81: #{tpu_custom_call.1} parent=79 // pred_check
          %p1670 = pneg %p321
        $region82: #{tpu_custom_call.1} parent=79 // pred_check_branch
          %1672 = sbr.rel (%p1670) target = $region84
        $region83: #{tpu_custom_call.1} parent=79 // pred_region
          %s1673 = sand.u32 %s306, 1
          %s1674 = scalar_lea.sflag [#allocation6], %s1673
          %s1675 = sand.u32 %s306, 1
          %s1676 = smul.addr %s1675, 32
          %s1677 = scalar_lea.vmem [#allocation5], %s1676
          %1678 = dma.done %s1674, 512
        $region84: #{tpu_custom_call.1} parent=79 // pred_fallthru
          _
      $region80: #{tpu_custom_call.1} parent=5 // pred_fallthru
        _
    $region6: #{tpu_custom_call.1} parent=1 // loop_footer
      %s25 = sadd.s32 1, %s21
    $region7: #{tpu_custom_call.1} parent=1 // loop_footer_branch
      %20 = sbr.rel target = $region3
    $region8: #{tpu_custom_call.1} parent=1 // loop_exit
      _
    %1679 = vsyncpa [#allocation6], 1
    %s1680 = scalar_lea.sflag [#allocation6], 1
    %1681 = vsyncpa %s1680, 1

</llo_original>
